<compile_context>
chip_gen: v6e
topology: v6e:2x2x1
jax: 0.10.0
libtpu: 0.0.40
codegen_flags: <defaults>
</compile_context>

<pallas_src>
import functools
import math

import jax
import jax.numpy as jnp
from jax.experimental import pallas as pl
from jax.experimental.pallas import tpu as pltpu

LN_EPS = 1e-6                       # torchvision ViT uses LayerNorm(eps=1e-6)
VMEM_LIMIT = 32 * 1024 * 1024       # explicit scoped-VMEM limit (safe on v5e/v6e/v7x)


def _pick_tile(dim, candidates):
    """Largest candidate that divides `dim`; otherwise a full-extent block (always legal)."""
    for c in candidates:
        if c <= dim and dim % c == 0:
            return c
    return dim


# --------------------------- fused matmul kernel -----------------------------
def _fused_mm_kernel(*refs, ln, add, activation):
    it = iter(refs)
    x_ref = next(it)
    if ln:
        g_ref = next(it)
        bt_ref = next(it)
    w_ref = next(it)
    b_ref = next(it)
    a_ref = next(it) if add else None
    o_ref = next(it)

    x = x_ref[...].astype(jnp.float32)
    if ln:                                           # fused LayerNorm over full K
        mean = jnp.mean(x, axis=-1, keepdims=True)
        xc = x - mean
        var = jnp.mean(xc * xc, axis=-1, keepdims=True)
        x = (xc * jax.lax.rsqrt(var + LN_EPS)
             * g_ref[...].astype(jnp.float32) + bt_ref[...].astype(jnp.float32))

    # bf16 operands for the MXU, f32 accumulation.
    y = jnp.dot(x.astype(jnp.bfloat16), w_ref[...].astype(jnp.bfloat16),
                preferred_element_type=jnp.float32)
    y = y + b_ref[...].astype(jnp.float32)

    if activation == "gelu":                         # exact erf GELU == torch nn.GELU()
        y = 0.5 * y * (1.0 + jax.lax.erf(y * (1.0 / math.sqrt(2.0))))
    elif activation == "tanh":
        y = jnp.tanh(y)

    if add:                                          # fused residual / pos-embedding add
        y = y + a_ref[...].astype(jnp.float32)

    o_ref[...] = y.astype(o_ref.dtype)


def fused_matmul(x, w, b, *, gamma=None, beta=None, add=None,
                 activation="none", out_dtype=jnp.float32):
    """out = act(LN?(x) @ w + b) [+ add];  x:(M,K), w:(K,N) bf16, b:(N,), add:(M,N)."""
    M, K = x.shape
    N = w.shape[1]
    tm = _pick_tile(M, (256, 128, 64, 32, 16, 8))
    tn = _pick_tile(N, (512, 256, 128))
    grid = (M // tm, N // tn)

    in_specs = [pl.BlockSpec((tm, K), lambda i, j: (i, 0))]
    args = [x]
    if gamma is not None:
        in_specs += [pl.BlockSpec((1, K), lambda i, j: (0, 0)),
                     pl.BlockSpec((1, K), lambda i, j: (0, 0))]
        args += [gamma.reshape(1, K), beta.reshape(1, K)]
    in_specs += [pl.BlockSpec((K, tn), lambda i, j: (0, j)),
                 pl.BlockSpec((1, tn), lambda i, j: (0, j))]
    args += [w, b.reshape(1, N)]
    if add is not None:
        in_specs.append(pl.BlockSpec((tm, tn), lambda i, j: (i, j)))
        args.append(add)

    kernel = functools.partial(_fused_mm_kernel, ln=gamma is not None,
                               add=add is not None, activation=activation)
    return pl.pallas_call(
        kernel,
        grid=grid,
        in_specs=in_specs,
        out_specs=pl.BlockSpec((tm, tn), lambda i, j: (i, j)),
        out_shape=jax.ShapeDtypeStruct((M, N), out_dtype),
        compiler_params=pltpu.CompilerParams(
            dimension_semantics=("parallel", "parallel"),
            vmem_limit_bytes=VMEM_LIMIT),
    )(*args)


# --------------------------- attention kernel --------------------------------
def _attention_kernel(qkv_ref, o_ref, *, num_heads, scale):
    qkv = qkv_ref[0]                                  # (S, 3D), bf16
    three_d = qkv.shape[-1]
    D = three_d // 3
    Dh = D // num_heads
    outs = []
    for h in range(num_heads):                        # static unroll; head split in-kernel
        q = (qkv[:, h * Dh:(h + 1) * Dh].astype(jnp.float32) * scale).astype(jnp.bfloat16)
        k = qkv[:, D + h * Dh: D + (h + 1) * Dh]
        v = qkv[:, 2 * D + h * Dh: 2 * D + (h + 1) * Dh]
        # scores = q @ k^T  (contract head dim), f32 accumulation
        s = jax.lax.dot_general(q, k, (((1,), (1,)), ((), ())),
                                preferred_element_type=jnp.float32)
        s = s - jnp.max(s, axis=-1, keepdims=True)
        p = jnp.exp(s)
        p = p * pl.reciprocal(jnp.sum(p, axis=-1, keepdims=True), approx=True)
        outs.append(jnp.dot(p.astype(jnp.bfloat16), v,
                            preferred_element_type=jnp.float32))
    # lane-dense (S, D) store: all heads merged at their D-offset in one write
    o_ref[0] = jnp.concatenate(outs, axis=-1).astype(o_ref.dtype)


def attention(qkv, num_heads, scale):
    """qkv: (B, S, 3D) packed [q|k|v] -> (B, S, D) lane-dense attention output."""
    B, S, three_d = qkv.shape
    D = three_d // 3
    return pl.pallas_call(
        functools.partial(_attention_kernel, num_heads=num_heads, scale=scale),
        grid=(B,),
        in_specs=[pl.BlockSpec((1, S, three_d), lambda b: (b, 0, 0))],
        out_specs=pl.BlockSpec((1, S, D), lambda b: (b, 0, 0)),
        out_shape=jax.ShapeDtypeStruct((B, S, D), jnp.float32),
        compiler_params=pltpu.CompilerParams(
            dimension_semantics=("parallel",),
            vmem_limit_bytes=VMEM_LIMIT),
    )(qkv)


# --------------------------- parameters --------------------------------------
def init_params(key, cfg):
    """Weights already pre-transposed to (K, N) and cast to bf16; biases / LN params f32."""
    D, C, P = cfg["hidden"], cfg["channels"], cfg["patch"]
    S = (cfg["image"] // P) ** 2 + 1
    mlp, L, latent = cfg["mlp"], cfg["layers"], cfg["latent"]
    bf16 = jnp.bfloat16

    def nrm(k, shape, std=0.02):
        return std * jax.random.normal(k, shape, dtype=jnp.float32)

    keys = iter(jax.random.split(key, 16 + 12 * L))
    params = {
        "conv_wt": nrm(next(keys), (C * P * P, D)).astype(bf16),   # Conv2d(C,D,P,P) flattened & transposed
        "conv_b": nrm(next(keys), (D,)),
        "class_token": jnp.zeros((1, 1, D), jnp.float32),
        "pos_embedding": nrm(next(keys), (1, S, D)),
        "ln_g": 1.0 + nrm(next(keys), (D,), 0.05),
        "ln_b": nrm(next(keys), (D,), 0.05),
        "head_wt": nrm(next(keys), (D, latent)).astype(bf16),
        "head_b": nrm(next(keys), (latent,)),
        "blocks": [],
    }
    for _ in range(L):
        params["blocks"].append({
            "ln1_g": 1.0 + nrm(next(keys), (D,), 0.05), "ln1_b": nrm(next(keys), (D,), 0.05),
            "in_proj_wt": nrm(next(keys), (D, 3 * D)).astype(bf16),
            "in_proj_b": nrm(next(keys), (3 * D,)),
            "out_proj_wt": nrm(next(keys), (D, D)).astype(bf16),
            "out_proj_b": nrm(next(keys), (D,)),
            "ln2_g": 1.0 + nrm(next(keys), (D,), 0.05), "ln2_b": nrm(next(keys), (D,), 0.05),
            "mlp_w1t": nrm(next(keys), (D, mlp)).astype(bf16),
            "mlp_b1": nrm(next(keys), (mlp,)),
            "mlp_w2t": nrm(next(keys), (mlp, D)).astype(bf16),
            "mlp_b2": nrm(next(keys), (D,)),
        })
    return params


# --------------------------- forward ------------------------------------------
def encoder_vit_forward(x, params, cfg):
    """x: (B, C, H, W) NCHW f32 -> (B, latent) in (-1, 1)."""
    B, C, Himg, Wimg = x.shape
    P, D, Hh = cfg["patch"], cfg["hidden"], cfg["heads"]
    nh, nw = Himg // P, Wimg // P
    S = nh * nw + 1
    Dh = D // Hh
    scale = 1.0 / math.sqrt(Dh)

    # Patch embedding (Conv2d(C, D, P, stride=P) == patch extract + matmul), with the patch
    # part of the positional embedding fused into the matmul epilogue.
    patches = (x.reshape(B, C, nh, P, nw, P)
                 .transpose(0, 2, 4, 1, 3, 5)
                 .reshape(B * nh * nw, C * P * P))
    pos_patch = jnp.broadcast_to(params["pos_embedding"][:, 1:, :],
                                 (B, nh * nw, D)).reshape(B * nh * nw, D)
    tok = fused_matmul(patches, params["conv_wt"], params["conv_b"], add=pos_patch)

    cls_row = params["class_token"][0, 0] + params["pos_embedding"][0, 0]
    seq = jnp.concatenate(
        [jnp.broadcast_to(cls_row, (B, 1, D)), tok.reshape(B, nh * nw, D)], axis=1)
    xflat = seq.reshape(B * S, D)                       # residual stream, f32

    for blk in params["blocks"]:
        # LN1 + packed QKV projection (bf16 intermediate, consumed by attention as bf16)
        qkv = fused_matmul(xflat, blk["in_proj_wt"], blk["in_proj_b"],
                           gamma=blk["ln1_g"], beta=blk["ln1_b"],
                           out_dtype=jnp.bfloat16)
        attn = attention(qkv.reshape(B, S, 3 * D), Hh, scale)          # (B, S, D)
        # out-proj + residual add (fused)
        xflat = fused_matmul(attn.reshape(B * S, D), blk["out_proj_wt"],
                             blk["out_proj_b"], add=xflat)
        # LN2 + MLP1 + exact GELU (fused, bf16 hidden)
        h = fused_matmul(xflat, blk["mlp_w1t"], blk["mlp_b1"],
                         gamma=blk["ln2_g"], beta=blk["ln2_b"],
                         activation="gelu", out_dtype=jnp.bfloat16)
        # MLP2 + residual add (fused)
        xflat = fused_matmul(h, blk["mlp_w2t"], blk["mlp_b2"], add=xflat)

    # Final LayerNorm only on the class-token rows, fused with head Linear + Tanh.
    cls_tok = xflat.reshape(B, S, D)[:, 0]
    return fused_matmul(cls_tok, params["head_wt"], params["head_b"],
                        gamma=params["ln_g"], beta=params["ln_b"],
                        activation="tanh")


# --------------------------- pure-JAX reference (f32) --------------------------
def reference_forward(x, params, cfg):
    B, C, Himg, Wimg = x.shape
    P, D, Hh = cfg["patch"], cfg["hidden"], cfg["heads"]
    nh, nw = Himg // P, Wimg // P
    S = nh * nw + 1
    Dh = D // Hh
    scale = 1.0 / math.sqrt(Dh)
    f32 = lambda a: a.astype(jnp.float32)

    def ln(v, g, b):
        m = v.mean(-1, keepdims=True)
        vc = v - m
        var = (vc * vc).mean(-1, keepdims=True)
        return vc * jax.lax.rsqrt(var + LN_EPS) * g + b

    patches = (x.reshape(B, C, nh, P, nw, P)
                 .transpose(0, 2, 4, 1, 3, 5)
                 .reshape(B * nh * nw, C * P * P))
    tok = patches @ f32(params["conv_wt"]) + params["conv_b"]
    seq = jnp.concatenate(
        [jnp.broadcast_to(params["class_token"], (B, 1, D)), tok.reshape(B, nh * nw, D)], 1)
    seq = seq + params["pos_embedding"]
    xf = seq.reshape(B * S, D)

    for blk in params["blocks"]:
        y = ln(xf, blk["ln1_g"], blk["ln1_b"])
        qkv = (y @ f32(blk["in_proj_wt"]) + blk["in_proj_b"]).reshape(B, S, 3, Hh, Dh)
        q = qkv[:, :, 0].transpose(0, 2, 1, 3)
        k = qkv[:, :, 1].transpose(0, 2, 1, 3)
        v = qkv[:, :, 2].transpose(0, 2, 1, 3)
        s = jnp.einsum("bhqd,bhkd->bhqk", q * scale, k)
        p = jax.nn.softmax(s, axis=-1)
        a = jnp.einsum("bhqk,bhkd->bhqd", p, v).transpose(0, 2, 1, 3).reshape(B * S, D)
        xf = xf + a @ f32(blk["out_proj_wt"]) + blk["out_proj_b"]
        y2 = ln(xf, blk["ln2_g"], blk["ln2_b"])
        h = y2 @ f32(blk["mlp_w1t"]) + blk["mlp_b1"]
        h = 0.5 * h * (1.0 + jax.lax.erf(h / jnp.sqrt(jnp.float32(2.0))))
        xf = xf + h @ f32(blk["mlp_w2t"]) + blk["mlp_b2"]

    cls = ln(xf.reshape(B, S, D)[:, 0], params["ln_g"], params["ln_b"])
    return jnp.tanh(cls @ f32(params["head_wt"]) + params["head_b"])


if __name__ == "__main__":
    # Small-shape ViT consistent with the module's structure (real vit_b_16:
    # image=224, patch=16, hidden=768, heads=12, mlp=3072, layers=12, S=197).
    cfg = dict(image=32, patch=16, channels=3, hidden=64, heads=4,
               mlp=128, layers=2, latent=8)

    key = jax.random.PRNGKey(0)
    k_x, k_p = jax.random.split(key)
    x = jax.random.normal(k_x, (2, cfg["channels"], cfg["image"], cfg["image"]),
                          dtype=jnp.float32)
    params = init_params(k_p, cfg)

    fwd = jax.jit(lambda xx, pp: encoder_vit_forward(xx, pp, cfg))
    out = jax.block_until_ready(fwd(x, params))

    assert out.shape == (2, cfg["latent"])
    assert bool(jnp.all(jnp.abs(out) <= 1.0))          # tanh range

    ref = reference_forward(x, params, cfg)
    err = float(jnp.max(jnp.abs(out.astype(jnp.float32) - ref)))
    assert err < 5e-2, f"mismatch vs reference: {err}"
    print("KERNEL_OK")
</pallas_src>

<mosaic_0001>
module attributes {stable_mosaic.version = 11 : i64} {
  func.func @_fused_mm_kernel(%arg0: i32, %arg1: i32, %arg2: memref<8x768xf32, #tpu.memory_space<vmem>>, %arg3: memref<768x64xbf16, #tpu.memory_space<vmem>>, %arg4: memref<1x64xf32, #tpu.memory_space<vmem>>, %arg5: memref<8x64xf32, #tpu.memory_space<vmem>>, %arg6: memref<8x64xf32, #tpu.memory_space<vmem>>) attributes {dimension_semantics = [#tpu.dimension_semantics<parallel>, #tpu.dimension_semantics<parallel>], iteration_bounds = array<i64: 1, 1>, scalar_prefetch = 0 : i64, scratch_operands = 0 : i64, tpu.core_type = #tpu.core_type<tc>, window_params = [{transform_indices = @transform_0, window_bounds = array<i64: 8, 768>}, {transform_indices = @transform_1, window_bounds = array<i64: 768, 64>}, {transform_indices = @transform_2, window_bounds = array<i64: 1, 64>}, {transform_indices = @transform_3, window_bounds = array<i64: 8, 64>}, {transform_indices = @transform_4, window_bounds = array<i64: 8, 64>}]} {
    %c0 = arith.constant 0 : index
    %c0_0 = arith.constant 0 : index
    %0 = vector.load %arg2[%c0, %c0_0] : memref<8x768xf32, #tpu.memory_space<vmem>>, vector<8x768xf32>
    %1 = arith.truncf %0 : vector<8x768xf32> to vector<8x768xbf16>
    %c0_1 = arith.constant 0 : index
    %c0_2 = arith.constant 0 : index
    %2 = vector.load %arg3[%c0_1, %c0_2] : memref<768x64xbf16, #tpu.memory_space<vmem>>, vector<768x64xbf16>
    %cst = arith.constant dense<0.000000e+00> : vector<8x64xf32>
    %3 = tpu.matmul %1, %2, %cst {dimension_numbers = #tpu.dot_dimension_numbers<[1], [0], [0], [1], [0, 0, 1, 1], [], []>} : vector<8x768xbf16>, vector<768x64xbf16>, vector<8x64xf32> -> vector<8x64xf32>
    %c0_3 = arith.constant 0 : index
    %c0_4 = arith.constant 0 : index
    %4 = vector.load %arg4[%c0_3, %c0_4] : memref<1x64xf32, #tpu.memory_space<vmem>>, vector<1x64xf32>
    %5 = vector.broadcast %4 : vector<1x64xf32> to vector<8x64xf32>
    %6 = arith.addf %3, %5 : vector<8x64xf32>
    %c0_5 = arith.constant 0 : index
    %c0_6 = arith.constant 0 : index
    %7 = vector.load %arg5[%c0_5, %c0_6] : memref<8x64xf32, #tpu.memory_space<vmem>>, vector<8x64xf32>
    %8 = arith.addf %6, %7 : vector<8x64xf32>
    %c0_7 = arith.constant 0 : index
    %c0_8 = arith.constant 0 : index
    %9 = vector.load %arg6[%c0_7, %c0_8] : memref<8x64xf32, #tpu.memory_space<vmem>>, vector<8x64xf32>
    tpu.vector_store %arg6[%c0_7, %c0_8], %8 {strides = array<i32>} : memref<8x64xf32, #tpu.memory_space<vmem>>, vector<8x64xf32>,
    return
  }
  func.func @transform_0(%arg0: i32, %arg1: i32) -> (i32, i32) {
    %c0_i32 = arith.constant 0 : i32
    %c0_i32_0 = arith.constant 0 : i32
    return %arg0, %c0_i32 : i32, i32
  }
  func.func @transform_1(%arg0: i32, %arg1: i32) -> (i32, i32) {
    %c0_i32 = arith.constant 0 : i32
    %c0_i32_0 = arith.constant 0 : i32
    return %c0_i32, %arg1 : i32, i32
  }
  func.func @transform_2(%arg0: i32, %arg1: i32) -> (i32, i32) {
    %c0_i32 = arith.constant 0 : i32
    %c0_i32_0 = arith.constant 0 : i32
    return %c0_i32, %arg1 : i32, i32
  }
  func.func @transform_3(%arg0: i32, %arg1: i32) -> (i32, i32) {
    %c0_i32 = arith.constant 0 : i32
    return %arg0, %arg1 : i32, i32
  }
  func.func @transform_4(%arg0: i32, %arg1: i32) -> (i32, i32) {
    %c0_i32 = arith.constant 0 : i32
    return %arg0, %arg1 : i32, i32
  }
}

module attributes {stable_mosaic.version = 11 : i64} {
  func.func @_fused_mm_kernel(%arg0: i32, %arg1: i32, %arg2: memref<10x64xf32, #tpu.memory_space<vmem>>, %arg3: memref<1x64xf32, #tpu.memory_space<vmem>>, %arg4: memref<1x64xf32, #tpu.memory_space<vmem>>, %arg5: memref<64x192xbf16, #tpu.memory_space<vmem>>, %arg6: memref<1x192xf32, #tpu.memory_space<vmem>>, %arg7: memref<10x192xbf16, #tpu.memory_space<vmem>>) attributes {dimension_semantics = [#tpu.dimension_semantics<parallel>, #tpu.dimension_semantics<parallel>], iteration_bounds = array<i64: 1, 1>, scalar_prefetch = 0 : i64, scratch_operands = 0 : i64, tpu.core_type = #tpu.core_type<tc>, window_params = [{transform_indices = @transform_0, window_bounds = array<i64: 10, 64>}, {pipeline_mode = #tpu.pipeline_mode<synchronous>, transform_indices = @transform_1, window_bounds = array<i64: 1, 64>}, {pipeline_mode = #tpu.pipeline_mode<synchronous>, transform_indices = @transform_2, window_bounds = array<i64: 1, 64>}, {transform_indices = @transform_3, window_bounds = array<i64: 64, 192>}, {transform_indices = @transform_4, window_bounds = array<i64: 1, 192>}, {transform_indices = @transform_5, window_bounds = array<i64: 10, 192>}]} {
    %c0 = arith.constant 0 : index
    %c0_0 = arith.constant 0 : index
    %0 = vector.load %arg2[%c0, %c0_0] : memref<10x64xf32, #tpu.memory_space<vmem>>, vector<10x64xf32>
    %cst = arith.constant dense<0.000000e+00> : vector<10xf32>
    %1 = vector.multi_reduction <add>, %0, %cst [1] : vector<10x64xf32> to vector<10xf32>
    %2 = vector.shape_cast %1 : vector<10xf32> to vector<10x1xf32>
    %cst_1 = arith.constant 6.400000e+01 : f32
    %3 = vector.broadcast %cst_1 : f32 to vector<10x1xf32>
    %4 = arith.divf %2, %3 : vector<10x1xf32>
    %5 = vector.broadcast %4 : vector<10x1xf32> to vector<10x64xf32>
    %6 = arith.subf %0, %5 : vector<10x64xf32>
    %7 = arith.mulf %6, %6 : vector<10x64xf32>
    %cst_2 = arith.constant dense<0.000000e+00> : vector<10xf32>
    %8 = vector.multi_reduction <add>, %7, %cst_2 [1] : vector<10x64xf32> to vector<10xf32>
    %9 = vector.shape_cast %8 : vector<10xf32> to vector<10x1xf32>
    %cst_3 = arith.constant 6.400000e+01 : f32
    %10 = vector.broadcast %cst_3 : f32 to vector<10x1xf32>
    %11 = arith.divf %9, %10 : vector<10x1xf32>
    %cst_4 = arith.constant 9.99999997E-7 : f32
    %12 = vector.broadcast %cst_4 : f32 to vector<10x1xf32>
    %13 = arith.addf %11, %12 : vector<10x1xf32>
    %14 = math.rsqrt %13 : vector<10x1xf32>
    %15 = vector.broadcast %14 : vector<10x1xf32> to vector<10x64xf32>
    %16 = arith.mulf %6, %15 : vector<10x64xf32>
    %c0_5 = arith.constant 0 : index
    %c0_6 = arith.constant 0 : index
    %17 = vector.load %arg3[%c0_5, %c0_6] : memref<1x64xf32, #tpu.memory_space<vmem>>, vector<1x64xf32>
    %18 = vector.broadcast %17 : vector<1x64xf32> to vector<10x64xf32>
    %19 = arith.mulf %16, %18 : vector<10x64xf32>
    %c0_7 = arith.constant 0 : index
    %c0_8 = arith.constant 0 : index
    %20 = vector.load %arg4[%c0_7, %c0_8] : memref<1x64xf32, #tpu.memory_space<vmem>>, vector<1x64xf32>
    %21 = vector.broadcast %20 : vector<1x64xf32> to vector<10x64xf32>
    %22 = arith.addf %19, %21 : vector<10x64xf32>
    %23 = arith.truncf %22 : vector<10x64xf32> to vector<10x64xbf16>
    %c0_9 = arith.constant 0 : index
    %c0_10 = arith.constant 0 : index
    %24 = vector.load %arg5[%c0_9, %c0_10] : memref<64x192xbf16, #tpu.memory_space<vmem>>, vector<64x192xbf16>
    %cst_11 = arith.constant dense<0.000000e+00> : vector<10x192xf32>
    %25 = tpu.matmul %23, %24, %cst_11 {dimension_numbers = #tpu.dot_dimension_numbers<[1], [0], [0], [1], [0, 0, 1, 1], [], []>} : vector<10x64xbf16>, vector<64x192xbf16>, vector<10x192xf32> -> vector<10x192xf32>
    %c0_12 = arith.constant 0 : index
    %c0_13 = arith.constant 0 : index
    %26 = vector.load %arg6[%c0_12, %c0_13] : memref<1x192xf32, #tpu.memory_space<vmem>>, vector<1x192xf32>
    %27 = vector.broadcast %26 : vector<1x192xf32> to vector<10x192xf32>
    %28 = arith.addf %25, %27 : vector<10x192xf32>
    %29 = arith.truncf %28 : vector<10x192xf32> to vector<10x192xbf16>
    %c0_14 = arith.constant 0 : index
    %c0_15 = arith.constant 0 : index
    %30 = vector.load %arg7[%c0_14, %c0_15] : memref<10x192xbf16, #tpu.memory_space<vmem>>, vector<10x192xbf16>
    tpu.vector_store %arg7[%c0_14, %c0_15], %29 {strides = array<i32>} : memref<10x192xbf16, #tpu.memory_space<vmem>>, vector<10x192xbf16>,
    return
  }
  func.func @transform_0(%arg0: i32, %arg1: i32) -> (i32, i32) {
    %c0_i32 = arith.constant 0 : i32
    %c0_i32_0 = arith.constant 0 : i32
    return %arg0, %c0_i32 : i32, i32
  }
  func.func @transform_1(%arg0: i32, %arg1: i32) -> (i32, i32) {
    %c0_i32 = arith.constant 0 : i32
    %c0_i32_0 = arith.constant 0 : i32
    %c0_i32_1 = arith.constant 0 : i32
    return %c0_i32, %c0_i32_0 : i32, i32
  }
  func.func @transform_2(%arg0: i32, %arg1: i32) -> (i32, i32) {
    %c0_i32 = arith.constant 0 : i32
    %c0_i32_0 = arith.constant 0 : i32
    %c0_i32_1 = arith.constant 0 : i32
    return %c0_i32, %c0_i32_0 : i32, i32
  }
  func.func @transform_3(%arg0: i32, %arg1: i32) -> (i32, i32) {
    %c0_i32 = arith.constant 0 : i32
    %c0_i32_0 = arith.constant 0 : i32
    return %c0_i32, %arg1 : i32, i32
  }
  func.func @transform_4(%arg0: i32, %arg1: i32) -> (i32, i32) {
    %c0_i32 = arith.constant 0 : i32
    %c0_i32_0 = arith.constant 0 : i32
    return %c0_i32, %arg1 : i32, i32
  }
  func.func @transform_5(%arg0: i32, %arg1: i32) -> (i32, i32) {
    %c0_i32 = arith.constant 0 : i32
    return %arg0, %arg1 : i32, i32
  }
}

module attributes {stable_mosaic.version = 11 : i64} {
  func.func @_fused_mm_kernel(%arg0: i32, %arg1: i32, %arg2: memref<10x64xf32, #tpu.memory_space<vmem>>, %arg3: memref<64x64xbf16, #tpu.memory_space<vmem>>, %arg4: memref<1x64xf32, #tpu.memory_space<vmem>>, %arg5: memref<10x64xf32, #tpu.memory_space<vmem>>, %arg6: memref<10x64xf32, #tpu.memory_space<vmem>>) attributes {dimension_semantics = [#tpu.dimension_semantics<parallel>, #tpu.dimension_semantics<parallel>], iteration_bounds = array<i64: 1, 1>, scalar_prefetch = 0 : i64, scratch_operands = 0 : i64, tpu.core_type = #tpu.core_type<tc>, window_params = [{transform_indices = @transform_0, window_bounds = array<i64: 10, 64>}, {transform_indices = @transform_1, window_bounds = array<i64: 64, 64>}, {transform_indices = @transform_2, window_bounds = array<i64: 1, 64>}, {transform_indices = @transform_3, window_bounds = array<i64: 10, 64>}, {transform_indices = @transform_4, window_bounds = array<i64: 10, 64>}]} {
    %c0 = arith.constant 0 : index
    %c0_0 = arith.constant 0 : index
    %0 = vector.load %arg2[%c0, %c0_0] : memref<10x64xf32, #tpu.memory_space<vmem>>, vector<10x64xf32>
    %1 = arith.truncf %0 : vector<10x64xf32> to vector<10x64xbf16>
    %c0_1 = arith.constant 0 : index
    %c0_2 = arith.constant 0 : index
    %2 = vector.load %arg3[%c0_1, %c0_2] : memref<64x64xbf16, #tpu.memory_space<vmem>>, vector<64x64xbf16>
    %cst = arith.constant dense<0.000000e+00> : vector<10x64xf32>
    %3 = tpu.matmul %1, %2, %cst {dimension_numbers = #tpu.dot_dimension_numbers<[1], [0], [0], [1], [0, 0, 1, 1], [], []>} : vector<10x64xbf16>, vector<64x64xbf16>, vector<10x64xf32> -> vector<10x64xf32>
    %c0_3 = arith.constant 0 : index
    %c0_4 = arith.constant 0 : index
    %4 = vector.load %arg4[%c0_3, %c0_4] : memref<1x64xf32, #tpu.memory_space<vmem>>, vector<1x64xf32>
    %5 = vector.broadcast %4 : vector<1x64xf32> to vector<10x64xf32>
    %6 = arith.addf %3, %5 : vector<10x64xf32>
    %c0_5 = arith.constant 0 : index
    %c0_6 = arith.constant 0 : index
    %7 = vector.load %arg5[%c0_5, %c0_6] : memref<10x64xf32, #tpu.memory_space<vmem>>, vector<10x64xf32>
    %8 = arith.addf %6, %7 : vector<10x64xf32>
    %c0_7 = arith.constant 0 : index
    %c0_8 = arith.constant 0 : index
    %9 = vector.load %arg6[%c0_7, %c0_8] : memref<10x64xf32, #tpu.memory_space<vmem>>, vector<10x64xf32>
    tpu.vector_store %arg6[%c0_7, %c0_8], %8 {strides = array<i32>} : memref<10x64xf32, #tpu.memory_space<vmem>>, vector<10x64xf32>,
    return
  }
  func.func @transform_0(%arg0: i32, %arg1: i32) -> (i32, i32) {
    %c0_i32 = arith.constant 0 : i32
    %c0_i32_0 = arith.constant 0 : i32
    return %arg0, %c0_i32 : i32, i32
  }
  func.func @transform_1(%arg0: i32, %arg1: i32) -> (i32, i32) {
    %c0_i32 = arith.constant 0 : i32
    %c0_i32_0 = arith.constant 0 : i32
    return %c0_i32, %arg1 : i32, i32
  }
  func.func @transform_2(%arg0: i32, %arg1: i32) -> (i32, i32) {
    %c0_i32 = arith.constant 0 : i32
    %c0_i32_0 = arith.constant 0 : i32
    return %c0_i32, %arg1 : i32, i32
  }
  func.func @transform_3(%arg0: i32, %arg1: i32) -> (i32, i32) {
    %c0_i32 = arith.constant 0 : i32
    return %arg0, %arg1 : i32, i32
  }
  func.func @transform_4(%arg0: i32, %arg1: i32) -> (i32, i32) {
    %c0_i32 = arith.constant 0 : i32
    return %arg0, %arg1 : i32, i32
  }
}

module attributes {stable_mosaic.version = 11 : i64} {
  func.func @_attention_kernel(%arg0: i32, %arg1: memref<1x5x192xbf16, #tpu.memory_space<vmem>>, %arg2: memref<1x5x64xf32, #tpu.memory_space<vmem>>) attributes {dimension_semantics = [#tpu.dimension_semantics<parallel>], iteration_bounds = array<i64: 2>, scalar_prefetch = 0 : i64, scratch_operands = 0 : i64, tpu.core_type = #tpu.core_type<tc>, window_params = [{transform_indices = @transform_0, window_bounds = array<i64: 1, 5, 192>}, {transform_indices = @transform_1, window_bounds = array<i64: 1, 5, 64>}]} {
    %c0 = arith.constant 0 : index
    %c0_0 = arith.constant 0 : index
    %c0_1 = arith.constant 0 : index
    %0 = vector.load %arg1[%c0, %c0_0, %c0_1] : memref<1x5x192xbf16, #tpu.memory_space<vmem>>, vector<1x5x192xbf16>
    %1 = vector.shape_cast %0 : vector<1x5x192xbf16> to vector<5x192xbf16>
    %2 = vector.extract_strided_slice %1 {offsets = [0, 0], sizes = [5, 16], strides = [1, 1]} : vector<5x192xbf16> to vector<5x16xbf16>
    %3 = arith.extf %2 : vector<5x16xbf16> to vector<5x16xf32>
    %cst = arith.constant 2.500000e-01 : f32
    %4 = vector.broadcast %cst : f32 to vector<5x16xf32>
    %5 = arith.mulf %3, %4 : vector<5x16xf32>
    %6 = arith.truncf %5 : vector<5x16xf32> to vector<5x16xbf16>
    %7 = vector.extract_strided_slice %1 {offsets = [0, 64], sizes = [5, 16], strides = [1, 1]} : vector<5x192xbf16> to vector<5x16xbf16>
    %8 = vector.extract_strided_slice %1 {offsets = [0, 128], sizes = [5, 16], strides = [1, 1]} : vector<5x192xbf16> to vector<5x16xbf16>
    %cst_2 = arith.constant dense<0.000000e+00> : vector<5x5xf32>
    %9 = tpu.matmul %6, %7, %cst_2 {dimension_numbers = #tpu.dot_dimension_numbers<[1], [1], [0], [0], [0, 0, 1, 0], [], []>} : vector<5x16xbf16>, vector<5x16xbf16>, vector<5x5xf32> -> vector<5x5xf32>
    %cst_3 = arith.constant dense<0xFF800000> : vector<5xf32>
    %10 = vector.multi_reduction <maximumf>, %9, %cst_3 [1] : vector<5x5xf32> to vector<5xf32>
    %11 = vector.shape_cast %10 : vector<5xf32> to vector<5x1xf32>
    %12 = vector.broadcast %11 : vector<5x1xf32> to vector<5x5xf32>
    %13 = arith.subf %9, %12 : vector<5x5xf32>
    %14 = math.exp %13 : vector<5x5xf32>
    %cst_4 = arith.constant dense<0.000000e+00> : vector<5xf32>
    %15 = vector.multi_reduction <add>, %14, %cst_4 [1] : vector<5x5xf32> to vector<5xf32>
    %16 = vector.shape_cast %15 : vector<5xf32> to vector<5x1xf32>
    %17 = tpu.reciprocal %16 {approx = true} : vector<5x1xf32> -> vector<5x1xf32>
    %18 = vector.broadcast %17 : vector<5x1xf32> to vector<5x5xf32>
    %19 = arith.mulf %14, %18 : vector<5x5xf32>
    %20 = arith.truncf %19 : vector<5x5xf32> to vector<5x5xbf16>
    %cst_5 = arith.constant dense<0.000000e+00> : vector<5x16xf32>
    %21 = tpu.matmul %20, %8, %cst_5 {dimension_numbers = #tpu.dot_dimension_numbers<[1], [0], [0], [1], [0, 0, 1, 1], [], []>} : vector<5x5xbf16>, vector<5x16xbf16>, vector<5x16xf32> -> vector<5x16xf32>
    %22 = vector.extract_strided_slice %1 {offsets = [0, 16], sizes = [5, 16], strides = [1, 1]} : vector<5x192xbf16> to vector<5x16xbf16>
    %23 = arith.extf %22 : vector<5x16xbf16> to vector<5x16xf32>
    %cst_6 = arith.constant 2.500000e-01 : f32
    %24 = vector.broadcast %cst_6 : f32 to vector<5x16xf32>
    %25 = arith.mulf %23, %24 : vector<5x16xf32>
    %26 = arith.truncf %25 : vector<5x16xf32> to vector<5x16xbf16>
    %27 = vector.extract_strided_slice %1 {offsets = [0, 80], sizes = [5, 16], strides = [1, 1]} : vector<5x192xbf16> to vector<5x16xbf16>
    %28 = vector.extract_strided_slice %1 {offsets = [0, 144], sizes = [5, 16], strides = [1, 1]} : vector<5x192xbf16> to vector<5x16xbf16>
    %cst_7 = arith.constant dense<0.000000e+00> : vector<5x5xf32>
    %29 = tpu.matmul %26, %27, %cst_7 {dimension_numbers = #tpu.dot_dimension_numbers<[1], [1], [0], [0], [0, 0, 1, 0], [], []>} : vector<5x16xbf16>, vector<5x16xbf16>, vector<5x5xf32> -> vector<5x5xf32>
    %cst_8 = arith.constant dense<0xFF800000> : vector<5xf32>
    %30 = vector.multi_reduction <maximumf>, %29, %cst_8 [1] : vector<5x5xf32> to vector<5xf32>
    %31 = vector.shape_cast %30 : vector<5xf32> to vector<5x1xf32>
    %32 = vector.broadcast %31 : vector<5x1xf32> to vector<5x5xf32>
    %33 = arith.subf %29, %32 : vector<5x5xf32>
    %34 = math.exp %33 : vector<5x5xf32>
    %cst_9 = arith.constant dense<0.000000e+00> : vector<5xf32>
    %35 = vector.multi_reduction <add>, %34, %cst_9 [1] : vector<5x5xf32> to vector<5xf32>
    %36 = vector.shape_cast %35 : vector<5xf32> to vector<5x1xf32>
    %37 = tpu.reciprocal %36 {approx = true} : vector<5x1xf32> -> vector<5x1xf32>
    %38 = vector.broadcast %37 : vector<5x1xf32> to vector<5x5xf32>
    %39 = arith.mulf %34, %38 : vector<5x5xf32>
    %40 = arith.truncf %39 : vector<5x5xf32> to vector<5x5xbf16>
    %cst_10 = arith.constant dense<0.000000e+00> : vector<5x16xf32>
    %41 = tpu.matmul %40, %28, %cst_10 {dimension_numbers = #tpu.dot_dimension_numbers<[1], [0], [0], [1], [0, 0, 1, 1], [], []>} : vector<5x5xbf16>, vector<5x16xbf16>, vector<5x16xf32> -> vector<5x16xf32>
    %42 = vector.extract_strided_slice %1 {offsets = [0, 32], sizes = [5, 16], strides = [1, 1]} : vector<5x192xbf16> to vector<5x16xbf16>
    %43 = arith.extf %42 : vector<5x16xbf16> to vector<5x16xf32>
    %cst_11 = arith.constant 2.500000e-01 : f32
    %44 = vector.broadcast %cst_11 : f32 to vector<5x16xf32>
    %45 = arith.mulf %43, %44 : vector<5x16xf32>
    %46 = arith.truncf %45 : vector<5x16xf32> to vector<5x16xbf16>
    %47 = vector.extract_strided_slice %1 {offsets = [0, 96], sizes = [5, 16], strides = [1, 1]} : vector<5x192xbf16> to vector<5x16xbf16>
    %48 = vector.extract_strided_slice %1 {offsets = [0, 160], sizes = [5, 16], strides = [1, 1]} : vector<5x192xbf16> to vector<5x16xbf16>
    %cst_12 = arith.constant dense<0.000000e+00> : vector<5x5xf32>
    %49 = tpu.matmul %46, %47, %cst_12 {dimension_numbers = #tpu.dot_dimension_numbers<[1], [1], [0], [0], [0, 0, 1, 0], [], []>} : vector<5x16xbf16>, vector<5x16xbf16>, vector<5x5xf32> -> vector<5x5xf32>
    %cst_13 = arith.constant dense<0xFF800000> : vector<5xf32>
    %50 = vector.multi_reduction <maximumf>, %49, %cst_13 [1] : vector<5x5xf32> to vector<5xf32>
    %51 = vector.shape_cast %50 : vector<5xf32> to vector<5x1xf32>
    %52 = vector.broadcast %51 : vector<5x1xf32> to vector<5x5xf32>
    %53 = arith.subf %49, %52 : vector<5x5xf32>
    %54 = math.exp %53 : vector<5x5xf32>
    %cst_14 = arith.constant dense<0.000000e+00> : vector<5xf32>
    %55 = vector.multi_reduction <add>, %54, %cst_14 [1] : vector<5x5xf32> to vector<5xf32>
    %56 = vector.shape_cast %55 : vector<5xf32> to vector<5x1xf32>
    %57 = tpu.reciprocal %56 {approx = true} : vector<5x1xf32> -> vector<5x1xf32>
    %58 = vector.broadcast %57 : vector<5x1xf32> to vector<5x5xf32>
    %59 = arith.mulf %54, %58 : vector<5x5xf32>
    %60 = arith.truncf %59 : vector<5x5xf32> to vector<5x5xbf16>
    %cst_15 = arith.constant dense<0.000000e+00> : vector<5x16xf32>
    %61 = tpu.matmul %60, %48, %cst_15 {dimension_numbers = #tpu.dot_dimension_numbers<[1], [0], [0], [1], [0, 0, 1, 1], [], []>} : vector<5x5xbf16>, vector<5x16xbf16>, vector<5x16xf32> -> vector<5x16xf32>
    %62 = vector.extract_strided_slice %1 {offsets = [0, 48], sizes = [5, 16], strides = [1, 1]} : vector<5x192xbf16> to vector<5x16xbf16>
    %63 = arith.extf %62 : vector<5x16xbf16> to vector<5x16xf32>
    %cst_16 = arith.constant 2.500000e-01 : f32
    %64 = vector.broadcast %cst_16 : f32 to vector<5x16xf32>
    %65 = arith.mulf %63, %64 : vector<5x16xf32>
    %66 = arith.truncf %65 : vector<5x16xf32> to vector<5x16xbf16>
    %67 = vector.extract_strided_slice %1 {offsets = [0, 112], sizes = [5, 16], strides = [1, 1]} : vector<5x192xbf16> to vector<5x16xbf16>
    %68 = vector.extract_strided_slice %1 {offsets = [0, 176], sizes = [5, 16], strides = [1, 1]} : vector<5x192xbf16> to vector<5x16xbf16>
    %cst_17 = arith.constant dense<0.000000e+00> : vector<5x5xf32>
    %69 = tpu.matmul %66, %67, %cst_17 {dimension_numbers = #tpu.dot_dimension_numbers<[1], [1], [0], [0], [0, 0, 1, 0], [], []>} : vector<5x16xbf16>, vector<5x16xbf16>, vector<5x5xf32> -> vector<5x5xf32>
    %cst_18 = arith.constant dense<0xFF800000> : vector<5xf32>
    %70 = vector.multi_reduction <maximumf>, %69, %cst_18 [1] : vector<5x5xf32> to vector<5xf32>
    %71 = vector.shape_cast %70 : vector<5xf32> to vector<5x1xf32>
    %72 = vector.broadcast %71 : vector<5x1xf32> to vector<5x5xf32>
    %73 = arith.subf %69, %72 : vector<5x5xf32>
    %74 = math.exp %73 : vector<5x5xf32>
    %cst_19 = arith.constant dense<0.000000e+00> : vector<5xf32>
    %75 = vector.multi_reduction <add>, %74, %cst_19 [1] : vector<5x5xf32> to vector<5xf32>
    %76 = vector.shape_cast %75 : vector<5xf32> to vector<5x1xf32>
    %77 = tpu.reciprocal %76 {approx = true} : vector<5x1xf32> -> vector<5x1xf32>
    %78 = vector.broadcast %77 : vector<5x1xf32> to vector<5x5xf32>
    %79 = arith.mulf %74, %78 : vector<5x5xf32>
    %80 = arith.truncf %79 : vector<5x5xf32> to vector<5x5xbf16>
    %cst_20 = arith.constant dense<0.000000e+00> : vector<5x16xf32>
    %81 = tpu.matmul %80, %68, %cst_20 {dimension_numbers = #tpu.dot_dimension_numbers<[1], [0], [0], [1], [0, 0, 1, 1], [], []>} : vector<5x5xbf16>, vector<5x16xbf16>, vector<5x16xf32> -> vector<5x16xf32>
    %82 = tpu.concatenate %21, %41, %61, %81 in 1 : vector<5x16xf32>, vector<5x16xf32>, vector<5x16xf32>, vector<5x16xf32> -> vector<5x64xf32>
    %c0_21 = arith.constant 0 : index
    %c0_22 = arith.constant 0 : index
    %c0_23 = arith.constant 0 : index
    %83 = vector.load %arg2[%c0_21, %c0_22, %c0_23] : memref<1x5x64xf32, #tpu.memory_space<vmem>>, vector<1x5x64xf32>
    %84 = vector.shape_cast %83 : vector<1x5x64xf32> to vector<5x64xf32>
    %85 = vector.shape_cast %82 : vector<5x64xf32> to vector<1x5x64xf32>
    tpu.vector_store %arg2[%c0_21, %c0_22, %c0_23], %85 {strides = array<i32>} : memref<1x5x64xf32, #tpu.memory_space<vmem>>, vector<1x5x64xf32>,
    return
  }
  func.func @transform_0(%arg0: i32) -> (i32, i32, i32) {
    %c0_i32 = arith.constant 0 : i32
    %c0_i32_0 = arith.constant 0 : i32
    %c0_i32_1 = arith.constant 0 : i32
    return %arg0, %c0_i32, %c0_i32_0 : i32, i32, i32
  }
  func.func @transform_1(%arg0: i32) -> (i32, i32, i32) {
    %c0_i32 = arith.constant 0 : i32
    %c0_i32_0 = arith.constant 0 : i32
    %c0_i32_1 = arith.constant 0 : i32
    return %arg0, %c0_i32, %c0_i32_0 : i32, i32, i32
  }
}

module attributes {stable_mosaic.version = 11 : i64} {
  func.func @_fused_mm_kernel(%arg0: i32, %arg1: i32, %arg2: memref<2x64xf32, #tpu.memory_space<vmem>>, %arg3: memref<1x64xf32, #tpu.memory_space<vmem>>, %arg4: memref<1x64xf32, #tpu.memory_space<vmem>>, %arg5: memref<64x8xbf16, #tpu.memory_space<vmem>>, %arg6: memref<1x8xf32, #tpu.memory_space<vmem>>, %arg7: memref<2x8xf32, #tpu.memory_space<vmem>>) attributes {dimension_semantics = [#tpu.dimension_semantics<parallel>, #tpu.dimension_semantics<parallel>], iteration_bounds = array<i64: 1, 1>, scalar_prefetch = 0 : i64, scratch_operands = 0 : i64, tpu.core_type = #tpu.core_type<tc>, window_params = [{transform_indices = @transform_0, window_bounds = array<i64: 2, 64>}, {pipeline_mode = #tpu.pipeline_mode<synchronous>, transform_indices = @transform_1, window_bounds = array<i64: 1, 64>}, {pipeline_mode = #tpu.pipeline_mode<synchronous>, transform_indices = @transform_2, window_bounds = array<i64: 1, 64>}, {transform_indices = @transform_3, window_bounds = array<i64: 64, 8>}, {transform_indices = @transform_4, window_bounds = array<i64: 1, 8>}, {transform_indices = @transform_5, window_bounds = array<i64: 2, 8>}]} {
    %c0 = arith.constant 0 : index
    %c0_0 = arith.constant 0 : index
    %0 = vector.load %arg2[%c0, %c0_0] : memref<2x64xf32, #tpu.memory_space<vmem>>, vector<2x64xf32>
    %cst = arith.constant dense<0.000000e+00> : vector<2xf32>
    %1 = vector.multi_reduction <add>, %0, %cst [1] : vector<2x64xf32> to vector<2xf32>
    %2 = vector.shape_cast %1 : vector<2xf32> to vector<2x1xf32>
    %cst_1 = arith.constant 6.400000e+01 : f32
    %3 = vector.broadcast %cst_1 : f32 to vector<2x1xf32>
    %4 = arith.divf %2, %3 : vector<2x1xf32>
    %5 = vector.broadcast %4 : vector<2x1xf32> to vector<2x64xf32>
    %6 = arith.subf %0, %5 : vector<2x64xf32>
    %7 = arith.mulf %6, %6 : vector<2x64xf32>
    %cst_2 = arith.constant dense<0.000000e+00> : vector<2xf32>
    %8 = vector.multi_reduction <add>, %7, %cst_2 [1] : vector<2x64xf32> to vector<2xf32>
    %9 = vector.shape_cast %8 : vector<2xf32> to vector<2x1xf32>
    %cst_3 = arith.constant 6.400000e+01 : f32
    %10 = vector.broadcast %cst_3 : f32 to vector<2x1xf32>
    %11 = arith.divf %9, %10 : vector<2x1xf32>
    %cst_4 = arith.constant 9.99999997E-7 : f32
    %12 = vector.broadcast %cst_4 : f32 to vector<2x1xf32>
    %13 = arith.addf %11, %12 : vector<2x1xf32>
    %14 = math.rsqrt %13 : vector<2x1xf32>
    %15 = vector.broadcast %14 : vector<2x1xf32> to vector<2x64xf32>
    %16 = arith.mulf %6, %15 : vector<2x64xf32>
    %c0_5 = arith.constant 0 : index
    %c0_6 = arith.constant 0 : index
    %17 = vector.load %arg3[%c0_5, %c0_6] : memref<1x64xf32, #tpu.memory_space<vmem>>, vector<1x64xf32>
    %18 = vector.broadcast %17 : vector<1x64xf32> to vector<2x64xf32>
    %19 = arith.mulf %16, %18 : vector<2x64xf32>
    %c0_7 = arith.constant 0 : index
    %c0_8 = arith.constant 0 : index
    %20 = vector.load %arg4[%c0_7, %c0_8] : memref<1x64xf32, #tpu.memory_space<vmem>>, vector<1x64xf32>
    %21 = vector.broadcast %20 : vector<1x64xf32> to vector<2x64xf32>
    %22 = arith.addf %19, %21 : vector<2x64xf32>
    %23 = arith.truncf %22 : vector<2x64xf32> to vector<2x64xbf16>
    %c0_9 = arith.constant 0 : index
    %c0_10 = arith.constant 0 : index
    %24 = vector.load %arg5[%c0_9, %c0_10] : memref<64x8xbf16, #tpu.memory_space<vmem>>, vector<64x8xbf16>
    %cst_11 = arith.constant dense<0.000000e+00> : vector<2x8xf32>
    %25 = tpu.matmul %23, %24, %cst_11 {dimension_numbers = #tpu.dot_dimension_numbers<[1], [0], [0], [1], [0, 0, 1, 1], [], []>} : vector<2x64xbf16>, vector<64x8xbf16>, vector<2x8xf32> -> vector<2x8xf32>
    %c0_12 = arith.constant 0 : index
    %c0_13 = arith.constant 0 : index
    %26 = vector.load %arg6[%c0_12, %c0_13] : memref<1x8xf32, #tpu.memory_space<vmem>>, vector<1x8xf32>
    %27 = vector.broadcast %26 : vector<1x8xf32> to vector<2x8xf32>
    %28 = arith.addf %25, %27 : vector<2x8xf32>
    %29 = math.tanh %28 : vector<2x8xf32>
    %c0_14 = arith.constant 0 : index
    %c0_15 = arith.constant 0 : index
    %30 = vector.load %arg7[%c0_14, %c0_15] : memref<2x8xf32, #tpu.memory_space<vmem>>, vector<2x8xf32>
    tpu.vector_store %arg7[%c0_14, %c0_15], %29 {strides = array<i32>} : memref<2x8xf32, #tpu.memory_space<vmem>>, vector<2x8xf32>,
    return
  }
  func.func @transform_0(%arg0: i32, %arg1: i32) -> (i32, i32) {
    %c0_i32 = arith.constant 0 : i32
    %c0_i32_0 = arith.constant 0 : i32
    return %arg0, %c0_i32 : i32, i32
  }
  func.func @transform_1(%arg0: i32, %arg1: i32) -> (i32, i32) {
    %c0_i32 = arith.constant 0 : i32
    %c0_i32_0 = arith.constant 0 : i32
    %c0_i32_1 = arith.constant 0 : i32
    return %c0_i32, %c0_i32_0 : i32, i32
  }
  func.func @transform_2(%arg0: i32, %arg1: i32) -> (i32, i32) {
    %c0_i32 = arith.constant 0 : i32
    %c0_i32_0 = arith.constant 0 : i32
    %c0_i32_1 = arith.constant 0 : i32
    return %c0_i32, %c0_i32_0 : i32, i32
  }
  func.func @transform_3(%arg0: i32, %arg1: i32) -> (i32, i32) {
    %c0_i32 = arith.constant 0 : i32
    %c0_i32_0 = arith.constant 0 : i32
    return %c0_i32, %arg1 : i32, i32
  }
  func.func @transform_4(%arg0: i32, %arg1: i32) -> (i32, i32) {
    %c0_i32 = arith.constant 0 : i32
    %c0_i32_0 = arith.constant 0 : i32
    return %c0_i32, %arg1 : i32, i32
  }
  func.func @transform_5(%arg0: i32, %arg1: i32) -> (i32, i32) {
    %c0_i32 = arith.constant 0 : i32
    return %arg0, %arg1 : i32, i32
  }
}

module attributes {stable_mosaic.version = 11 : i64} {
  func.func @_fused_mm_kernel(%arg0: i32, %arg1: i32, %arg2: memref<10x128xbf16, #tpu.memory_space<vmem>>, %arg3: memref<128x64xbf16, #tpu.memory_space<vmem>>, %arg4: memref<1x64xf32, #tpu.memory_space<vmem>>, %arg5: memref<10x64xf32, #tpu.memory_space<vmem>>, %arg6: memref<10x64xf32, #tpu.memory_space<vmem>>) attributes {dimension_semantics = [#tpu.dimension_semantics<parallel>, #tpu.dimension_semantics<parallel>], iteration_bounds = array<i64: 1, 1>, scalar_prefetch = 0 : i64, scratch_operands = 0 : i64, tpu.core_type = #tpu.core_type<tc>, window_params = [{transform_indices = @transform_0, window_bounds = array<i64: 10, 128>}, {transform_indices = @transform_1, window_bounds = array<i64: 128, 64>}, {transform_indices = @transform_2, window_bounds = array<i64: 1, 64>}, {transform_indices = @transform_3, window_bounds = array<i64: 10, 64>}, {transform_indices = @transform_4, window_bounds = array<i64: 10, 64>}]} {
    %c0 = arith.constant 0 : index
    %c0_0 = arith.constant 0 : index
    %0 = vector.load %arg2[%c0, %c0_0] : memref<10x128xbf16, #tpu.memory_space<vmem>>, vector<10x128xbf16>
    %1 = arith.extf %0 : vector<10x128xbf16> to vector<10x128xf32>
    %2 = arith.truncf %1 : vector<10x128xf32> to vector<10x128xbf16>
    %c0_1 = arith.constant 0 : index
    %c0_2 = arith.constant 0 : index
    %3 = vector.load %arg3[%c0_1, %c0_2] : memref<128x64xbf16, #tpu.memory_space<vmem>>, vector<128x64xbf16>
    %cst = arith.constant dense<0.000000e+00> : vector<10x64xf32>
    %4 = tpu.matmul %2, %3, %cst {dimension_numbers = #tpu.dot_dimension_numbers<[1], [0], [0], [1], [0, 0, 1, 1], [], []>} : vector<10x128xbf16>, vector<128x64xbf16>, vector<10x64xf32> -> vector<10x64xf32>
    %c0_3 = arith.constant 0 : index
    %c0_4 = arith.constant 0 : index
    %5 = vector.load %arg4[%c0_3, %c0_4] : memref<1x64xf32, #tpu.memory_space<vmem>>, vector<1x64xf32>
    %6 = vector.broadcast %5 : vector<1x64xf32> to vector<10x64xf32>
    %7 = arith.addf %4, %6 : vector<10x64xf32>
    %c0_5 = arith.constant 0 : index
    %c0_6 = arith.constant 0 : index
    %8 = vector.load %arg5[%c0_5, %c0_6] : memref<10x64xf32, #tpu.memory_space<vmem>>, vector<10x64xf32>
    %9 = arith.addf %7, %8 : vector<10x64xf32>
    %c0_7 = arith.constant 0 : index
    %c0_8 = arith.constant 0 : index
    %10 = vector.load %arg6[%c0_7, %c0_8] : memref<10x64xf32, #tpu.memory_space<vmem>>, vector<10x64xf32>
    tpu.vector_store %arg6[%c0_7, %c0_8], %9 {strides = array<i32>} : memref<10x64xf32, #tpu.memory_space<vmem>>, vector<10x64xf32>,
    return
  }
  func.func @transform_0(%arg0: i32, %arg1: i32) -> (i32, i32) {
    %c0_i32 = arith.constant 0 : i32
    %c0_i32_0 = arith.constant 0 : i32
    return %arg0, %c0_i32 : i32, i32
  }
  func.func @transform_1(%arg0: i32, %arg1: i32) -> (i32, i32) {
    %c0_i32 = arith.constant 0 : i32
    %c0_i32_0 = arith.constant 0 : i32
    return %c0_i32, %arg1 : i32, i32
  }
  func.func @transform_2(%arg0: i32, %arg1: i32) -> (i32, i32) {
    %c0_i32 = arith.constant 0 : i32
    %c0_i32_0 = arith.constant 0 : i32
    return %c0_i32, %arg1 : i32, i32
  }
  func.func @transform_3(%arg0: i32, %arg1: i32) -> (i32, i32) {
    %c0_i32 = arith.constant 0 : i32
    return %arg0, %arg1 : i32, i32
  }
  func.func @transform_4(%arg0: i32, %arg1: i32) -> (i32, i32) {
    %c0_i32 = arith.constant 0 : i32
    return %arg0, %arg1 : i32, i32
  }
}

module attributes {stable_mosaic.version = 11 : i64} {
  func.func @_fused_mm_kernel(%arg0: i32, %arg1: i32, %arg2: memref<10x64xf32, #tpu.memory_space<vmem>>, %arg3: memref<1x64xf32, #tpu.memory_space<vmem>>, %arg4: memref<1x64xf32, #tpu.memory_space<vmem>>, %arg5: memref<64x128xbf16, #tpu.memory_space<vmem>>, %arg6: memref<1x128xf32, #tpu.memory_space<vmem>>, %arg7: memref<10x128xbf16, #tpu.memory_space<vmem>>) attributes {dimension_semantics = [#tpu.dimension_semantics<parallel>, #tpu.dimension_semantics<parallel>], iteration_bounds = array<i64: 1, 1>, scalar_prefetch = 0 : i64, scratch_operands = 0 : i64, tpu.core_type = #tpu.core_type<tc>, window_params = [{transform_indices = @transform_0, window_bounds = array<i64: 10, 64>}, {pipeline_mode = #tpu.pipeline_mode<synchronous>, transform_indices = @transform_1, window_bounds = array<i64: 1, 64>}, {pipeline_mode = #tpu.pipeline_mode<synchronous>, transform_indices = @transform_2, window_bounds = array<i64: 1, 64>}, {transform_indices = @transform_3, window_bounds = array<i64: 64, 128>}, {transform_indices = @transform_4, window_bounds = array<i64: 1, 128>}, {transform_indices = @transform_5, window_bounds = array<i64: 10, 128>}]} {
    %c0 = arith.constant 0 : index
    %c0_0 = arith.constant 0 : index
    %0 = vector.load %arg2[%c0, %c0_0] : memref<10x64xf32, #tpu.memory_space<vmem>>, vector<10x64xf32>
    %cst = arith.constant dense<0.000000e+00> : vector<10xf32>
    %1 = vector.multi_reduction <add>, %0, %cst [1] : vector<10x64xf32> to vector<10xf32>
    %2 = vector.shape_cast %1 : vector<10xf32> to vector<10x1xf32>
    %cst_1 = arith.constant 6.400000e+01 : f32
    %3 = vector.broadcast %cst_1 : f32 to vector<10x1xf32>
    %4 = arith.divf %2, %3 : vector<10x1xf32>
    %5 = vector.broadcast %4 : vector<10x1xf32> to vector<10x64xf32>
    %6 = arith.subf %0, %5 : vector<10x64xf32>
    %7 = arith.mulf %6, %6 : vector<10x64xf32>
    %cst_2 = arith.constant dense<0.000000e+00> : vector<10xf32>
    %8 = vector.multi_reduction <add>, %7, %cst_2 [1] : vector<10x64xf32> to vector<10xf32>
    %9 = vector.shape_cast %8 : vector<10xf32> to vector<10x1xf32>
    %cst_3 = arith.constant 6.400000e+01 : f32
    %10 = vector.broadcast %cst_3 : f32 to vector<10x1xf32>
    %11 = arith.divf %9, %10 : vector<10x1xf32>
    %cst_4 = arith.constant 9.99999997E-7 : f32
    %12 = vector.broadcast %cst_4 : f32 to vector<10x1xf32>
    %13 = arith.addf %11, %12 : vector<10x1xf32>
    %14 = math.rsqrt %13 : vector<10x1xf32>
    %15 = vector.broadcast %14 : vector<10x1xf32> to vector<10x64xf32>
    %16 = arith.mulf %6, %15 : vector<10x64xf32>
    %c0_5 = arith.constant 0 : index
    %c0_6 = arith.constant 0 : index
    %17 = vector.load %arg3[%c0_5, %c0_6] : memref<1x64xf32, #tpu.memory_space<vmem>>, vector<1x64xf32>
    %18 = vector.broadcast %17 : vector<1x64xf32> to vector<10x64xf32>
    %19 = arith.mulf %16, %18 : vector<10x64xf32>
    %c0_7 = arith.constant 0 : index
    %c0_8 = arith.constant 0 : index
    %20 = vector.load %arg4[%c0_7, %c0_8] : memref<1x64xf32, #tpu.memory_space<vmem>>, vector<1x64xf32>
    %21 = vector.broadcast %20 : vector<1x64xf32> to vector<10x64xf32>
    %22 = arith.addf %19, %21 : vector<10x64xf32>
    %23 = arith.truncf %22 : vector<10x64xf32> to vector<10x64xbf16>
    %c0_9 = arith.constant 0 : index
    %c0_10 = arith.constant 0 : index
    %24 = vector.load %arg5[%c0_9, %c0_10] : memref<64x128xbf16, #tpu.memory_space<vmem>>, vector<64x128xbf16>
    %cst_11 = arith.constant dense<0.000000e+00> : vector<10x128xf32>
    %25 = tpu.matmul %23, %24, %cst_11 {dimension_numbers = #tpu.dot_dimension_numbers<[1], [0], [0], [1], [0, 0, 1, 1], [], []>} : vector<10x64xbf16>, vector<64x128xbf16>, vector<10x128xf32> -> vector<10x128xf32>
    %c0_12 = arith.constant 0 : index
    %c0_13 = arith.constant 0 : index
    %26 = vector.load %arg6[%c0_12, %c0_13] : memref<1x128xf32, #tpu.memory_space<vmem>>, vector<1x128xf32>
    %27 = vector.broadcast %26 : vector<1x128xf32> to vector<10x128xf32>
    %28 = arith.addf %25, %27 : vector<10x128xf32>
    %cst_14 = arith.constant 5.000000e-01 : f32
    %29 = vector.broadcast %cst_14 : f32 to vector<10x128xf32>
    %30 = arith.mulf %29, %28 : vector<10x128xf32>
    %cst_15 = arith.constant 0.707106769 : f32
    %31 = vector.broadcast %cst_15 : f32 to vector<10x128xf32>
    %32 = arith.mulf %28, %31 : vector<10x128xf32>
    %33 = math.erf %32 : vector<10x128xf32>
    %cst_16 = arith.constant 1.000000e+00 : f32
    %34 = vector.broadcast %cst_16 : f32 to vector<10x128xf32>
    %35 = arith.addf %34, %33 : vector<10x128xf32>
    %36 = arith.mulf %30, %35 : vector<10x128xf32>
    %37 = arith.truncf %36 : vector<10x128xf32> to vector<10x128xbf16>
    %c0_17 = arith.constant 0 : index
    %c0_18 = arith.constant 0 : index
    %38 = vector.load %arg7[%c0_17, %c0_18] : memref<10x128xbf16, #tpu.memory_space<vmem>>, vector<10x128xbf16>
    tpu.vector_store %arg7[%c0_17, %c0_18], %37 {strides = array<i32>} : memref<10x128xbf16, #tpu.memory_space<vmem>>, vector<10x128xbf16>,
    return
  }
  func.func @transform_0(%arg0: i32, %arg1: i32) -> (i32, i32) {
    %c0_i32 = arith.constant 0 : i32
    %c0_i32_0 = arith.constant 0 : i32
    return %arg0, %c0_i32 : i32, i32
  }
  func.func @transform_1(%arg0: i32, %arg1: i32) -> (i32, i32) {
    %c0_i32 = arith.constant 0 : i32
    %c0_i32_0 = arith.constant 0 : i32
    %c0_i32_1 = arith.constant 0 : i32
    return %c0_i32, %c0_i32_0 : i32, i32
  }
  func.func @transform_2(%arg0: i32, %arg1: i32) -> (i32, i32) {
    %c0_i32 = arith.constant 0 : i32
    %c0_i32_0 = arith.constant 0 : i32
    %c0_i32_1 = arith.constant 0 : i32
    return %c0_i32, %c0_i32_0 : i32, i32
  }
  func.func @transform_3(%arg0: i32, %arg1: i32) -> (i32, i32) {
    %c0_i32 = arith.constant 0 : i32
    %c0_i32_0 = arith.constant 0 : i32
    return %c0_i32, %arg1 : i32, i32
  }
  func.func @transform_4(%arg0: i32, %arg1: i32) -> (i32, i32) {
    %c0_i32 = arith.constant 0 : i32
    %c0_i32_0 = arith.constant 0 : i32
    return %c0_i32, %arg1 : i32, i32
  }
  func.func @transform_5(%arg0: i32, %arg1: i32) -> (i32, i32) {
    %c0_i32 = arith.constant 0 : i32
    return %arg0, %arg1 : i32, i32
  }
}

</mosaic_0001>

<llo_original>
// kernel: _lambda_.15
$region0: #{_lambda_.15}
  #allocation0 [shape = 'u32[]', space=smem, size = 0x4, offset = 0x4, fixed_abs, tag = 'smem constant byte address 0x4 - core index']
  #allocation1 [shape = 'u32[144,128]{1,0:T(1,128)}', space=vmem, size = 0x12000, scoped, tag = 'internal scratch']
  %s0 = inlined_call_operand.vmem [shape: f32[10,64], index: 0, kind: input, shape index: {}]
  %s1 = inlined_call_operand.vmem [shape: bf16[64,64], index: 1, kind: input, shape index: {}]
  %s2 = inlined_call_operand.vmem [shape: f32[1,64], index: 2, kind: input, shape index: {}]
  %s3 = inlined_call_operand.vmem [shape: f32[10,64], index: 3, kind: input, shape index: {}]
  %s4 = inlined_call_operand.vmem [shape: f32[10,64], index: 4, kind: output, shape index: {}]
  %s5 = sld [smem:[#allocation0]]
  $region26: #{_lambda_.15} parent=0
    _
  %s7 = ssub.s32 1, %s5
  %s8 = scalar_select 0, %s7, %s5
  // Predicated region
  $region2: #{_lambda_.15} parent=0 // pred_check
    _
  $region3: #{_lambda_.15} parent=0 // pred_check_branch
    %10 = sbr.rel (0) target = $region5
  $region4: #{_lambda_.15} parent=0 // pred_region
    _
  $region5: #{_lambda_.15} parent=0 // pred_fallthru
    _
  // Predicated region
  $region6: #{_lambda_.15} parent=0 // pred_check
    _
  $region7: #{_lambda_.15} parent=0 // pred_check_branch
    %12 = sbr.rel (0) target = $region9
  $region8: #{_lambda_.15} parent=0 // pred_region
    _
  $region9: #{_lambda_.15} parent=0 // pred_fallthru
    _
  // Predicated region
  $region10: #{_lambda_.15} parent=0 // pred_check
    _
  $region11: #{_lambda_.15} parent=0 // pred_check_branch
    %14 = sbr.rel (0) target = $region13
  $region12: #{_lambda_.15} parent=0 // pred_region
    _
  $region13: #{_lambda_.15} parent=0 // pred_fallthru
    _
  // Predicated region
  $region14: #{_lambda_.15} parent=0 // pred_check
    _
  $region15: #{_lambda_.15} parent=0 // pred_check_branch
    %16 = sbr.rel (0) target = $region17
  $region16: #{_lambda_.15} parent=0 // pred_region
    _
  $region17: #{_lambda_.15} parent=0 // pred_fallthru
    _
  %v18 = vld [vmem:[%s0] sm:$0xff]
  %v19 = vld [vmem:[%s0 + $0x8] sm:$0x3]
  %v20 = vpack.c.bf16 %v19, %v18
  %v21 = vld [vmem:[%s1] sm:$0xf]
  %v22 = vld [vmem:[%s1 + $0x4] sm:$0xf]
  %v23 = vld [vmem:[%s1 + $0x8] sm:$0xf]
  %v24 = vld [vmem:[%s1 + $0xc] sm:$0xf]
  %v25 = vld [vmem:[%s1 + $0x10] sm:$0xf]
  %v26 = vld [vmem:[%s1 + $0x14] sm:$0xf]
  %v27 = vld [vmem:[%s1 + $0x18] sm:$0xf]
  %v28 = vld [vmem:[%s1 + $0x1c] sm:$0xf]
  %v29 = vld [vmem:[%s2] sm:$0x1]
  %v31 = vlaneseq
  %v32 = vshrl.u32 %v31, 7
  %v33 = vsub.s32 0, %v32
  %v34 = vrot.slane %v29, %v33
  %v44 = vunpack.c.l.b16 %v21
  %v45 = vunpack.c.l.b16 %v22
  %v46 = vunpack.c.l.b16 %v23
  %v47 = vunpack.c.l.b16 %v24
  %v48 = vunpack.c.l.b16 %v25
  %v49 = vunpack.c.l.b16 %v26
  %v50 = vunpack.c.l.b16 %v27
  %v51 = vunpack.c.l.b16 %v28
  %v52 = vpack.c.b16 %v45, %v44
  %v53 = vpack.c.b16 %v47, %v46
  %v54 = vpack.c.b16 %v49, %v48
  %v55 = vpack.c.b16 %v51, %v50
  %vm60 = vcmask 523264
  %v62 = vsel %vm60, %v20, 0
  %64 = vmatprep.subr.bf16.mxu0 0
  %65 = vmatpush1.bf16.msra.mxu0 0
  %66 = vmatprep.subr.bf16.mxu0 0
  %67 = vmatpush1.bf16.msra.mxu0 0
  %68 = vmatprep.subr.bf16.mxu0 0
  %69 = vmatpush1.bf16.msra.mxu0 0
  %70 = vmatprep.subr.bf16.mxu0 0
  %71 = vmatpush1.bf16.msra.mxu0 0
  %72 = vmatprep.subr.bf16.mxu0 0
  %73 = vmatpush1.bf16.msra.mxu0 %v55
  %74 = vmatprep.subr.bf16.mxu0 0
  %75 = vmatpush1.bf16.msra.mxu0 %v54
  %76 = vmatprep.subr.bf16.mxu0 0
  %77 = vmatpush1.bf16.msra.mxu0 %v53
  %78 = vmatprep.subr.bf16.mxu0 0
  %79 = vmatpush1.bf16.msra.mxu0 %v52
  %80 = vmatprep.subr.bf16.mxu0 0
  %81 = vmatpush2.bf16.msra.mxu0 0
  %82 = vmatprep.subr.bf16.mxu0 0
  %83 = vmatpush2.bf16.msra.mxu0 0
  %84 = vmatprep.subr.bf16.mxu0 0
  %85 = vmatpush2.bf16.msra.mxu0 0
  %86 = vmatprep.subr.bf16.mxu0 0
  %87 = vmatpush2.bf16.msra.mxu0 0
  %88 = vmatprep.subr.bf16.mxu0 0
  %89 = vmatpush2.bf16.msra.mxu0 0
  %90 = vmatprep.subr.bf16.mxu0 0
  %91 = vmatpush2.bf16.msra.mxu0 0
  %92 = vmatprep.subr.bf16.mxu0 0
  %93 = vmatpush2.bf16.msra.mxu0 0
  %94 = vmatprep.subr.bf16.mxu0 0
  %95 = vmatpush2.bf16.msra.mxu0 0
  %96 = vmatprep.mubr.bf16.mxu0 0
  %97 = vmatmul.mubr.bf16.gmra.mxu0 %v62
  %v98 = vpop.f32.mrf.mxu0
  %v99 = vadd.f32 %v34, %v98
  %v100 = vpop.f32.mrf.mxu0
  %v101 = vpop.f32.mrf.mxu0
  %v102 = vadd.f32 %v34, %v101
  %v103 = vpop.f32.mrf.mxu0
  %104 = vdwg.mxu0
  %v105 = vld [vmem:[%s3] sm:$0xff]
  %v106 = vld [vmem:[%s3 + $0x8] sm:$0x3]
  %v107 = vadd.f32 %v99, %v105
  %v108 = vadd.f32 %v102, %v106
  %109 = vst.msk [vmem:[%s4] sm:$0xff] %vm60, %v107
  %vm110 = vcmask 517120
  %111 = vst.msk [vmem:[%s4 + $0x8] sm:$0x3] %vm110, %v108
  // Predicated region
  $region18: #{_lambda_.15} parent=0 // pred_check
    _
  $region19: #{_lambda_.15} parent=0 // pred_check_branch
    %113 = sbr.rel (0) target = $region21
  $region20: #{_lambda_.15} parent=0 // pred_region
    _
  $region21: #{_lambda_.15} parent=0 // pred_fallthru
    _
  // Predicated region
  $region22: #{_lambda_.15} parent=0 // pred_check
    _
  $region23: #{_lambda_.15} parent=0 // pred_check_branch
    %115 = sbr.rel (0) target = $region25
  $region24: #{_lambda_.15} parent=0 // pred_region
    _
  $region25: #{_lambda_.15} parent=0 // pred_fallthru
    _

// kernel: _lambda_.13
$region0: #{_lambda_.13}
  #allocation0 [shape = 'u32[]', space=smem, size = 0x4, offset = 0x4, fixed_abs, tag = 'smem constant byte address 0x4 - core index']
  #allocation1 [shape = 'u32[144,128]{1,0:T(1,128)}', space=vmem, size = 0x12000, scoped, tag = 'internal scratch']
  %s0 = inlined_call_operand.vmem [shape: f32[10,64], index: 0, kind: input, shape index: {}]
  %s1 = inlined_call_operand.vmem [shape: f32[1,64], index: 1, kind: input, shape index: {}]
  %s2 = inlined_call_operand.vmem [shape: f32[1,64], index: 2, kind: input, shape index: {}]
  %s3 = inlined_call_operand.vmem [shape: bf16[64,192], index: 3, kind: input, shape index: {}]
  %s4 = inlined_call_operand.vmem [shape: f32[1,192], index: 4, kind: input, shape index: {}]
  %s5 = inlined_call_operand.vmem [shape: bf16[10,192], index: 5, kind: output, shape index: {}]
  %s6 = sld [smem:[#allocation0]]
  $region30: #{_lambda_.13} parent=0
    _
  %s8 = ssub.s32 1, %s6
  %s9 = scalar_select 0, %s8, %s6
  // Predicated region
  $region2: #{_lambda_.13} parent=0 // pred_check
    _
  $region3: #{_lambda_.13} parent=0 // pred_check_branch
    %11 = sbr.rel (0) target = $region5
  $region4: #{_lambda_.13} parent=0 // pred_region
    _
  $region5: #{_lambda_.13} parent=0 // pred_fallthru
    _
  // Predicated region
  $region6: #{_lambda_.13} parent=0 // pred_check
    _
  $region7: #{_lambda_.13} parent=0 // pred_check_branch
    %13 = sbr.rel (0) target = $region9
  $region8: #{_lambda_.13} parent=0 // pred_region
    _
  $region9: #{_lambda_.13} parent=0 // pred_fallthru
    _
  // Predicated region
  $region10: #{_lambda_.13} parent=0 // pred_check
    _
  $region11: #{_lambda_.13} parent=0 // pred_check_branch
    %15 = sbr.rel (0) target = $region13
  $region12: #{_lambda_.13} parent=0 // pred_region
    _
  $region13: #{_lambda_.13} parent=0 // pred_fallthru
    _
  // Predicated region
  $region14: #{_lambda_.13} parent=0 // pred_check
    _
  $region15: #{_lambda_.13} parent=0 // pred_check_branch
    %17 = sbr.rel (0) target = $region17
  $region16: #{_lambda_.13} parent=0 // pred_region
    _
  $region17: #{_lambda_.13} parent=0 // pred_fallthru
    _
  // Predicated region
  $region18: #{_lambda_.13} parent=0 // pred_check
    _
  $region19: #{_lambda_.13} parent=0 // pred_check_branch
    %19 = sbr.rel (0) target = $region21
  $region20: #{_lambda_.13} parent=0 // pred_region
    _
  $region21: #{_lambda_.13} parent=0 // pred_fallthru
    _
  %v21 = vld [vmem:[%s0] sm:$0xff]
  %v22 = vld [vmem:[%s0 + $0x8] sm:$0x3]
  %vm23 = vcmask 523264
  %v24 = vsel %vm23, %v21, 0.0
  %25 = vadd.xlane.f32.xlu0 %v24
  %v26 = vpop.xlane.xlu0 %25
  %vm27 = vcmask 517120
  %v28 = vsel %vm27, %v22, 0.0
  %29 = vadd.xlane.f32.xlu0 %v28
  %v30 = vpop.xlane.xlu0 %29
  %v31 = vrcp.pop 64.0
  %v32 = vmul.f32 %v26, %v31
  %v33 = vmul.f32 %v30, %v31
  %v34 = vsub.f32 %v21, %v32
  %v35 = vsub.f32 %v22, %v33
  %v36 = vmul.f32 %v34, %v34
  %v37 = vmul.f32 %v35, %v35
  %v38 = vsel %vm23, %v36, 0.0
  %39 = vadd.xlane.f32.xlu0 %v38
  %v40 = vpop.xlane.xlu0 %39
  %v41 = vsel %vm27, %v37, 0.0
  %42 = vadd.xlane.f32.xlu0 %v41
  %v43 = vpop.xlane.xlu0 %42
  %v44 = vmul.f32 %v40, %v31
  %v45 = vmul.f32 %v43, %v31
  %v46 = vadd.f32 %v44, 1e-06
  %v47 = vadd.f32 %v45, 1e-06
  %v48 = vrsqrt.pop %v46
  %v49 = vrsqrt.pop %v47
  %v50 = vmul.f32 %v34, %v48
  %v51 = vmul.f32 %v35, %v49
  %v52 = vld [vmem:[%s1] sm:$0x1]
  %v54 = vlaneseq
  %v55 = vshrl.u32 %v54, 7
  %v56 = vsub.s32 0, %v55
  %v57 = vrot.slane %v52, %v56
  %v59 = vmul.f32 %v50, %v57
  %v60 = vmul.f32 %v51, %v57
  %v61 = vld [vmem:[%s2] sm:$0x1]
  %v63 = vlaneseq
  %v64 = vshrl.u32 %v63, 7
  %v65 = vsub.s32 0, %v64
  %v66 = vrot.slane %v61, %v65
  %v68 = vadd.f32 %v59, %v66
  %v69 = vadd.f32 %v60, %v66
  %v70 = vpack.c.bf16 %v69, %v68
  %v71 = vld [vmem:[%s3] sm:$0xff]
  %v72 = vld [vmem:[%s3 + $0x8] sm:$0xff]
  %v73 = vld [vmem:[%s3 + $0x10] sm:$0xff]
  %v74 = vld [vmem:[%s3 + $0x18] sm:$0xff]
  %v75 = vld [vmem:[%s3 + $0x20] sm:$0xff]
  %v76 = vld [vmem:[%s3 + $0x28] sm:$0xff]
  %v77 = vld [vmem:[%s3 + $0x30] sm:$0xff]
  %v78 = vld [vmem:[%s3 + $0x38] sm:$0xff]
  %v79 = vld [vmem:[%s4] sm:$0x3]
  %v81 = vlaneseq
  %v82 = vshrl.u32 %v81, 7
  %v83 = vsub.s32 0, %v82
  %v84 = vrot.slane %v79, %v83
  %v85 = vlaneseq
  %v86 = vshrl.u32 %v85, 7
  %v87 = vsub.s32 1, %v86
  %v88 = vrot.slane %v79, %v87
  %v99 = vunpack.c.l.b16 %v71
  %v100 = vunpack.c.h.b16 %v71
  %v101 = vunpack.c.l.b16 %v72
  %v102 = vunpack.c.h.b16 %v72
  %v103 = vunpack.c.l.b16 %v73
  %v104 = vunpack.c.h.b16 %v73
  %v105 = vunpack.c.l.b16 %v74
  %v106 = vunpack.c.h.b16 %v74
  %v107 = vunpack.c.l.b16 %v75
  %v108 = vunpack.c.h.b16 %v75
  %v109 = vunpack.c.l.b16 %v76
  %v110 = vunpack.c.h.b16 %v76
  %v111 = vunpack.c.l.b16 %v77
  %v112 = vunpack.c.h.b16 %v77
  %v113 = vunpack.c.l.b16 %v78
  %v114 = vunpack.c.h.b16 %v78
  %v115 = vpack.c.b16 %v101, %v99
  %v116 = vpack.c.b16 %v102, %v100
  %v117 = vpack.c.b16 %v105, %v103
  %v118 = vpack.c.b16 %v106, %v104
  %v119 = vpack.c.b16 %v109, %v107
  %v120 = vpack.c.b16 %v110, %v108
  %v121 = vpack.c.b16 %v113, %v111
  %v122 = vpack.c.b16 %v114, %v112
  %v132 = vsel %vm23, %v70, 0
  %134 = vmatprep.subr.bf16.mxu0 0
  %135 = vmatpush1.bf16.msra.mxu0 0
  %136 = vmatprep.subr.bf16.mxu0 0
  %137 = vmatpush1.bf16.msra.mxu0 0
  %138 = vmatprep.subr.bf16.mxu0 0
  %139 = vmatpush1.bf16.msra.mxu0 0
  %140 = vmatprep.subr.bf16.mxu0 0
  %141 = vmatpush1.bf16.msra.mxu0 0
  %142 = vmatprep.subr.bf16.mxu0 %v122
  %143 = vmatpush1.bf16.msra.mxu0 %v121
  %144 = vmatprep.subr.bf16.mxu0 %v120
  %145 = vmatpush1.bf16.msra.mxu0 %v119
  %146 = vmatprep.subr.bf16.mxu0 %v118
  %147 = vmatpush1.bf16.msra.mxu0 %v117
  %148 = vmatprep.subr.bf16.mxu0 %v116
  %149 = vmatpush1.bf16.msra.mxu0 %v115
  %150 = vmatprep.subr.bf16.mxu0 0
  %151 = vmatpush2.bf16.msra.mxu0 0
  %152 = vmatprep.subr.bf16.mxu0 0
  %153 = vmatpush2.bf16.msra.mxu0 0
  %154 = vmatprep.subr.bf16.mxu0 0
  %155 = vmatpush2.bf16.msra.mxu0 0
  %156 = vmatprep.subr.bf16.mxu0 0
  %157 = vmatpush2.bf16.msra.mxu0 0
  %158 = vmatprep.subr.bf16.mxu0 0
  %159 = vmatpush2.bf16.msra.mxu0 0
  %160 = vmatprep.subr.bf16.mxu0 0
  %161 = vmatpush2.bf16.msra.mxu0 0
  %162 = vmatprep.subr.bf16.mxu0 0
  %163 = vmatpush2.bf16.msra.mxu0 0
  %164 = vmatprep.subr.bf16.mxu0 0
  %165 = vmatpush2.bf16.msra.mxu0 0
  %166 = vmatprep.mubr.bf16.mxu0 0
  %167 = vmatmul.mubr.bf16.gmra.mxu0 %v132
  %v168 = vpop.f32.mrf.mxu0
  %v169 = vadd.f32 %v84, %v168
  %v170 = vpop.f32.mrf.mxu0
  %v171 = vadd.f32 %v88, %v170
  %v172 = vpop.f32.mrf.mxu0
  %v173 = vadd.f32 %v84, %v172
  %v174 = vpop.f32.mrf.mxu0
  %v175 = vadd.f32 %v88, %v174
  %176 = vdwg.mxu0
  %v177 = vpack.c.bf16 %v173, %v169
  %v178 = vpack.c.bf16 %v175, %v171
  %v181 = vunpack.c.l.b16 %v177
  %v182 = vunpack.c.l.b16 %v178
  %v183 = vunpack.c.h.b16 %v177
  %v184 = vunpack.c.h.b16 %v178
  %v185 = vpack.c.b16 %v182, %v181
  %v186 = vpack.c.b16 %v184, %v183
  %vm189 = vcmask 1043456
  %vm190 = vcmask 523268
  %vm191 = vmor %vm190, %vm189
  %192 = vst.msk [vmem:[%s5] sm:$0xff] %vm191, %v185
  %vm193 = vcmask 1040384
  %vm194 = vcmask 520196
  %vm195 = vmor %vm194, %vm193
  %196 = vst.msk [vmem:[%s5 + $0x8] sm:$0x11] %vm195, %v186
  // Predicated region
  $region22: #{_lambda_.13} parent=0 // pred_check
    _
  $region23: #{_lambda_.13} parent=0 // pred_check_branch
    %198 = sbr.rel (0) target = $region25
  $region24: #{_lambda_.13} parent=0 // pred_region
    _
  $region25: #{_lambda_.13} parent=0 // pred_fallthru
    _
  // Predicated region
  $region26: #{_lambda_.13} parent=0 // pred_check
    _
  $region27: #{_lambda_.13} parent=0 // pred_check_branch
    %200 = sbr.rel (0) target = $region29
  $region28: #{_lambda_.13} parent=0 // pred_region
    _
  $region29: #{_lambda_.13} parent=0 // pred_fallthru
    _

// kernel: _lambda_.14
$region0: #{_lambda_.14}
  #allocation0 [shape = 'u32[]', space=smem, size = 0x4, offset = 0x4, fixed_abs, tag = 'smem constant byte address 0x4 - core index']
  #allocation1 [shape = 'u32[144,128]{1,0:T(1,128)}', space=vmem, size = 0x12000, scoped, tag = 'internal scratch']
  %s0 = inlined_call_operand.vmem [shape: bf16[2,5,192], index: 0, kind: input, shape index: {}]
  %s1 = inlined_call_operand.vmem [shape: f32[2,5,64], index: 1, kind: output, shape index: {}]
  %s2 = sld [smem:[#allocation0]]
  $region37: #{_lambda_.14} parent=0
    _
  %s4 = ssub.s32 1, %s2
  %s5 = scalar_select 0, %s4, %s2
  loop: start=0, step=1, limit=4
  $region2: #{_lambda_.14} parent=0 // loop_pre_header
    _
  $region3: #{_lambda_.14} parent=0 // loop_header
    %s7 = sphi 0, %s11
    %p8 = scmp.ge.s32.totalorder %s7, 4
    %s17 = sphi 0, %s19
    %s20 = sphi 0, %s17
    %s21 = sphi 0, %s20
    %s37 = sphi 0, %s21
    %s43 = sphi 0, %s45
    %s46 = sphi 0, %s43
    %s47 = sphi 0, %s46
    %s63 = sphi 0, %s47
  $region4: #{_lambda_.14} parent=0 // loop_header_branch
    %10 = sbr.rel (%p8) target = $region8
  $region5: #{_lambda_.14} parent=0 // loop_body
    %s12 = ssub.s32 %s7, 1
    %s13 = ssub.s32 %s7, 2
    %s14 = sadd.s32 %s7, 1
    %s15 = ssub.s32 %s7, %s14
    %p16 = scmp.eq.s32.totalorder %s15, 0
    %s18 = sadd.s32 %s17, 1
    %s19 = scalar_select %p16, %s17, %s18
    %p22 = pneg %p16
    %p23 = scmp.eq.s32.totalorder %s7, 1
    %p24 = por %p22, %p23
    %p25 = scmp.ne.s32.totalorder %s17, %s20
    %p26 = scmp.eq.s32.totalorder %s7, 0
    %p27 = por %p25, %p26
    %p28 = scmp.ne.s32.totalorder %s17, %s20
    %p29 = scmp.eq.s32.totalorder %s12, 1
    %p30 = por %p28, %p29
    %p31 = scmp.ne.s32.totalorder %s20, %s21
    %p32 = scmp.eq.s32.totalorder %s12, 0
    %p33 = por %p31, %p32
    %p34 = scmp.ne.s32.totalorder %s20, %s21
    %p35 = scmp.eq.s32.totalorder %s13, 1
    %p36 = por %p34, %p35
    %p38 = scmp.ne.s32.totalorder %s21, %s37
    %p39 = scmp.eq.s32.totalorder %s13, 0
    %p40 = por %p38, %p39
    %s41 = ssub.s32 %s7, %s14
    %p42 = scmp.eq.s32.totalorder %s41, 0
    %s44 = sadd.s32 %s43, 1
    %s45 = scalar_select %p42, %s43, %s44
    %p48 = pneg %p42
    %p49 = scmp.eq.s32.totalorder %s7, 1
    %p50 = por %p48, %p49
    %p51 = scmp.ne.s32.totalorder %s43, %s46
    %p52 = scmp.eq.s32.totalorder %s7, 0
    %p53 = por %p51, %p52
    %p54 = scmp.ne.s32.totalorder %s43, %s46
    %p55 = scmp.eq.s32.totalorder %s12, 1
    %p56 = por %p54, %p55
    %p57 = scmp.ne.s32.totalorder %s46, %s47
    %p58 = scmp.eq.s32.totalorder %s12, 0
    %p59 = por %p57, %p58
    %p60 = scmp.ne.s32.totalorder %s46, %s47
    %p61 = scmp.eq.s32.totalorder %s13, 1
    %p62 = por %p60, %p61
    %p64 = scmp.ne.s32.totalorder %s47, %s63
    %p65 = scmp.eq.s32.totalorder %s13, 0
    %p66 = por %p64, %p65
    %p67 = scmp.le.s32.totalorder 1, %s7
    %p68 = scmp.lt.s32.totalorder %s7, 3
    %p69 = pnand %p67, %p68
    %p70 = pneg %p69
    // Predicated region
    $region9: #{_lambda_.14} parent=5 // pred_check
      _
    $region10: #{_lambda_.14} parent=5 // pred_check_branch
      %72 = sbr.rel (%p69) target = $region12
    $region11: #{_lambda_.14} parent=5 // pred_region
      %s73 = ssub.s32 %s7, 1
    $region12: #{_lambda_.14} parent=5 // pred_fallthru
      _
    %p74 = scmp.lt.s32.totalorder %s7, 2
    // Predicated region
    $region13: #{_lambda_.14} parent=5 // pred_check
      %p75 = pneg %p74
    $region14: #{_lambda_.14} parent=5 // pred_check_branch
      %77 = sbr.rel (%p75) target = $region16
    $region15: #{_lambda_.14} parent=5 // pred_region
      // Predicated region
      $region17: #{_lambda_.14} parent=15 // pred_check
        %p78 = pneg %p27
      $region18: #{_lambda_.14} parent=15 // pred_check_branch
        %80 = sbr.rel (%p78) target = $region20
      $region19: #{_lambda_.14} parent=15 // pred_region
        %p81 = scmp.lt.s32.totalorder %s7, 1
        %s82 = scalar_select %p81, %s7, 1
        %s83 = smul.addr %s82, 2
        %s84 = smul.addr %s83, 4
        %s85 = scalar_lea.vmem %s0, %s84
      $region20: #{_lambda_.14} parent=15 // pred_fallthru
        _
    $region16: #{_lambda_.14} parent=5 // pred_fallthru
      _
    %p86 = scmp.le.s32.totalorder 1, %s7
    %p87 = scmp.lt.s32.totalorder %s7, 3
    %p88 = pnand %p86, %p87
    %p89 = pneg %p88
    // Predicated region
    $region21: #{_lambda_.14} parent=5 // pred_check
      _
    $region22: #{_lambda_.14} parent=5 // pred_check_branch
      %91 = sbr.rel (%p88) target = $region24
    $region23: #{_lambda_.14} parent=5 // pred_region
      %s92 = ssub.s32 %s7, 1
      %p93 = scmp.lt.s32.totalorder %s12, 1
      %s94 = scalar_select %p93, %s12, 1
      %s95 = smul.addr %s94, 2
      %s96 = smul.addr %s95, 4
      %s97 = scalar_lea.vmem %s0, %s96
      %p98 = pneg %p33
      %p99 = pneg %p30
      %p100 = pneg %p59
      %p101 = pneg %p56
      %p102 = scmp.lt.s32.totalorder %s12, 1
      %s103 = scalar_select %p102, %s12, 1
      %s104 = smul.addr %s103, 8
      %s105 = scalar_lea.vmem %s1, %s104
      %p106 = scmp.lt.s32.totalorder %s12, 1
      %s107 = scalar_select %p106, %s12, 1
      %s108 = smul.addr %s107, 2
      %s109 = smul.addr %s108, 4
      %s110 = scalar_lea.vmem %s0, %s109
      %p111 = scmp.lt.s32.totalorder %s12, 1
      %s112 = scalar_select %p111, %s12, 1
      %s113 = smul.addr %s112, 8
      %s114 = scalar_lea.vmem %s1, %s113
      %v116 = vld [vmem:[%s110] sm:$0x77]
      %v117 = vunpack.c.l.bf16 %v116
      %v118 = vmul.f32 %v117, 0.25
      %v119 = vpack.c.bf16 %v118, %v118
      %v121 = vunpack.c.l.b16 %v116
      %v122 = vpack.c.b16 %v121, %v121
      %123 = vrot.lane.b32.xlu0 %v122, 64
      %v124 = vpop.permute.xlu0 %123
      %vm125 = vcmask 130048
      %v127 = vsel %vm125, %v119, 0
      %v130 = vsel %vm125, %v124, 0
      %132 = vmatprep.subr.bf16.mxu0 0
      %133 = vmatpush1.bf16.xpose.msra.mxu0 0
      %134 = vmatprep.subr.bf16.mxu0 0
      %135 = vmatpush1.bf16.xpose.msra.mxu0 0
      %136 = vmatprep.subr.bf16.mxu0 0
      %137 = vmatpush1.bf16.xpose.msra.mxu0 0
      %138 = vmatprep.subr.bf16.mxu0 0
      %139 = vmatpush1.bf16.xpose.msra.mxu0 0
      %140 = vmatprep.subr.bf16.mxu0 0
      %141 = vmatpush1.bf16.xpose.msra.mxu0 0
      %142 = vmatprep.subr.bf16.mxu0 0
      %143 = vmatpush1.bf16.xpose.msra.mxu0 0
      %144 = vmatprep.subr.bf16.mxu0 0
      %145 = vmatpush1.bf16.xpose.msra.mxu0 0
      %146 = vmatprep.subr.bf16.mxu0 0
      %147 = vmatpush1.bf16.xpose.msra.mxu0 %v130
      %148 = vmatprep.subr.bf16.mxu0 0
      %149 = vmatpush2.bf16.xpose.msra.mxu0 0
      %150 = vmatprep.subr.bf16.mxu0 0
      %151 = vmatpush2.bf16.xpose.msra.mxu0 0
      %152 = vmatprep.subr.bf16.mxu0 0
      %153 = vmatpush2.bf16.xpose.msra.mxu0 0
      %154 = vmatprep.subr.bf16.mxu0 0
      %155 = vmatpush2.bf16.xpose.msra.mxu0 0
      %156 = vmatprep.subr.bf16.mxu0 0
      %157 = vmatpush2.bf16.xpose.msra.mxu0 0
      %158 = vmatprep.subr.bf16.mxu0 0
      %159 = vmatpush2.bf16.xpose.msra.mxu0 0
      %160 = vmatprep.subr.bf16.mxu0 0
      %161 = vmatpush2.bf16.xpose.msra.mxu0 0
      %162 = vmatprep.subr.bf16.mxu0 0
      %163 = vmatpush2.bf16.xpose.msra.mxu0 0
      %164 = vmatprep.mubr.bf16.mxu0 0
      %165 = vmatmul.mubr.bf16.gmra.mxu0 %v127
      %v166 = vpop.f32.mrf.mxu0
      %v167 = vadd.f32 0.0, %v166
      %v168 = vpop.f32.mrf.mxu0
      %v169 = vpop.f32.mrf.mxu0
      %v170 = vpop.f32.mrf.mxu0
      %171 = vdwg.mxu0
      %vm172 = vcmask 36864
      %v173 = vsel %vm172, %v167, -inf
      %174 = vmax.xlane.f32.xlu0 %v173
      %v175 = vpop.xlane.xlu0 %174
      %v176 = vsub.f32 %v167, %v175
      %v177 = vmul.f32 %v176, 1.442695
      %v178 = vpow.pop %v177
      %v179 = vsel %vm172, %v178, 0.0
      %180 = vadd.xlane.f32.xlu0 %v179
      %v181 = vpop.xlane.xlu0 %180
      %v182 = vrcp.pop %v181
      %v183 = vmul.f32 %v178, %v182
      %v184 = vpack.c.bf16 %v183, %v183
      %v185 = vunpack.c.h.b16 %v116
      %v186 = vpack.c.b16 %v185, %v185
      %vm187 = vcmask 39936
      %v189 = vsel %vm187, %v184, 0
      %vm191 = vcmask 1041408
      %vm192 = vcmask 1042432
      %v193 = vsel %vm191, 4294967295, 65535
      %v194 = vsel %vm192, %v193, 0
      %v196 = vand.u32 %v186, %v194
      %198 = vmatprep.subr.bf16.mxu0 0
      %199 = vmatpush1.bf16.msra.mxu0 0
      %200 = vmatprep.subr.bf16.mxu0 0
      %201 = vmatpush1.bf16.msra.mxu0 0
      %202 = vmatprep.subr.bf16.mxu0 0
      %203 = vmatpush1.bf16.msra.mxu0 0
      %204 = vmatprep.subr.bf16.mxu0 0
      %205 = vmatpush1.bf16.msra.mxu0 0
      %206 = vmatprep.subr.bf16.mxu0 0
      %207 = vmatpush1.bf16.msra.mxu0 0
      %208 = vmatprep.subr.bf16.mxu0 0
      %209 = vmatpush1.bf16.msra.mxu0 0
      %210 = vmatprep.subr.bf16.mxu0 0
      %211 = vmatpush1.bf16.msra.mxu0 0
      %212 = vmatprep.subr.bf16.mxu0 0
      %213 = vmatpush1.bf16.msra.mxu0 %v196
      %214 = vmatprep.subr.bf16.mxu0 0
      %215 = vmatpush2.bf16.msra.mxu0 0
      %216 = vmatprep.subr.bf16.mxu0 0
      %217 = vmatpush2.bf16.msra.mxu0 0
      %218 = vmatprep.subr.bf16.mxu0 0
      %219 = vmatpush2.bf16.msra.mxu0 0
      %220 = vmatprep.subr.bf16.mxu0 0
      %221 = vmatpush2.bf16.msra.mxu0 0
      %222 = vmatprep.subr.bf16.mxu0 0
      %223 = vmatpush2.bf16.msra.mxu0 0
      %224 = vmatprep.subr.bf16.mxu0 0
      %225 = vmatpush2.bf16.msra.mxu0 0
      %226 = vmatprep.subr.bf16.mxu0 0
      %227 = vmatpush2.bf16.msra.mxu0 0
      %228 = vmatprep.subr.bf16.mxu0 0
      %229 = vmatpush2.bf16.msra.mxu0 0
      %230 = vmatprep.mubr.bf16.mxu0 0
      %231 = vmatmul.mubr.bf16.gmra.mxu0 %v189
      %v232 = vpop.f32.mrf.mxu0
      %v233 = vadd.f32 0.0, %v232
      %v234 = vpop.f32.mrf.mxu0
      %v235 = vpop.f32.mrf.mxu0
      %v236 = vpop.f32.mrf.mxu0
      %237 = vdwg.mxu0
      %239 = vrot.lane.b32.xlu0 %v119, 112
      %v240 = vpop.permute.xlu0 %239
      %241 = vrot.lane.b32.xlu0 %v122, 48
      %v242 = vpop.permute.xlu0 %241
      %v244 = vsel %vm125, %v240, 0
      %v247 = vsel %vm125, %v242, 0
      %249 = vmatprep.subr.bf16.mxu0 0
      %250 = vmatpush1.bf16.xpose.msra.mxu0 0
      %251 = vmatprep.subr.bf16.mxu0 0
      %252 = vmatpush1.bf16.xpose.msra.mxu0 0
      %253 = vmatprep.subr.bf16.mxu0 0
      %254 = vmatpush1.bf16.xpose.msra.mxu0 0
      %255 = vmatprep.subr.bf16.mxu0 0
      %256 = vmatpush1.bf16.xpose.msra.mxu0 0
      %257 = vmatprep.subr.bf16.mxu0 0
      %258 = vmatpush1.bf16.xpose.msra.mxu0 0
      %259 = vmatprep.subr.bf16.mxu0 0
      %260 = vmatpush1.bf16.xpose.msra.mxu0 0
      %261 = vmatprep.subr.bf16.mxu0 0
      %262 = vmatpush1.bf16.xpose.msra.mxu0 0
      %263 = vmatprep.subr.bf16.mxu0 0
      %264 = vmatpush1.bf16.xpose.msra.mxu0 %v247
      %265 = vmatprep.subr.bf16.mxu0 0
      %266 = vmatpush2.bf16.xpose.msra.mxu0 0
      %267 = vmatprep.subr.bf16.mxu0 0
      %268 = vmatpush2.bf16.xpose.msra.mxu0 0
      %269 = vmatprep.subr.bf16.mxu0 0
      %270 = vmatpush2.bf16.xpose.msra.mxu0 0
      %271 = vmatprep.subr.bf16.mxu0 0
      %272 = vmatpush2.bf16.xpose.msra.mxu0 0
      %273 = vmatprep.subr.bf16.mxu0 0
      %274 = vmatpush2.bf16.xpose.msra.mxu0 0
      %275 = vmatprep.subr.bf16.mxu0 0
      %276 = vmatpush2.bf16.xpose.msra.mxu0 0
      %277 = vmatprep.subr.bf16.mxu0 0
      %278 = vmatpush2.bf16.xpose.msra.mxu0 0
      %279 = vmatprep.subr.bf16.mxu0 0
      %280 = vmatpush2.bf16.xpose.msra.mxu0 0
      %281 = vmatprep.mubr.bf16.mxu0 0
      %282 = vmatmul.mubr.bf16.gmra.mxu0 %v244
      %v283 = vpop.f32.mrf.mxu0
      %v284 = vadd.f32 0.0, %v283
      %v285 = vpop.f32.mrf.mxu0
      %v286 = vpop.f32.mrf.mxu0
      %v287 = vpop.f32.mrf.mxu0
      %288 = vdwg.mxu0
      %v289 = vsel %vm172, %v284, -inf
      %290 = vmax.xlane.f32.xlu0 %v289
      %v291 = vpop.xlane.xlu0 %290
      %v292 = vsub.f32 %v284, %v291
      %v293 = vmul.f32 %v292, 1.442695
      %v294 = vpow.pop %v293
      %v295 = vsel %vm172, %v294, 0.0
      %296 = vadd.xlane.f32.xlu0 %v295
      %v297 = vpop.xlane.xlu0 %296
      %v298 = vrcp.pop %v297
      %v299 = vmul.f32 %v294, %v298
      %v300 = vpack.c.bf16 %v299, %v299
      %301 = vrot.lane.b32.xlu0 %v186, 112
      %v302 = vpop.permute.xlu0 %301
      %v304 = vsel %vm187, %v300, 0
      %v307 = vand.u32 %v302, %v194
      %309 = vmatprep.subr.bf16.mxu0 0
      %310 = vmatpush1.bf16.msra.mxu0 0
      %311 = vmatprep.subr.bf16.mxu0 0
      %312 = vmatpush1.bf16.msra.mxu0 0
      %313 = vmatprep.subr.bf16.mxu0 0
      %314 = vmatpush1.bf16.msra.mxu0 0
      %315 = vmatprep.subr.bf16.mxu0 0
      %316 = vmatpush1.bf16.msra.mxu0 0
      %317 = vmatprep.subr.bf16.mxu0 0
      %318 = vmatpush1.bf16.msra.mxu0 0
      %319 = vmatprep.subr.bf16.mxu0 0
      %320 = vmatpush1.bf16.msra.mxu0 0
      %321 = vmatprep.subr.bf16.mxu0 0
      %322 = vmatpush1.bf16.msra.mxu0 0
      %323 = vmatprep.subr.bf16.mxu0 0
      %324 = vmatpush1.bf16.msra.mxu0 %v307
      %325 = vmatprep.subr.bf16.mxu0 0
      %326 = vmatpush2.bf16.msra.mxu0 0
      %327 = vmatprep.subr.bf16.mxu0 0
      %328 = vmatpush2.bf16.msra.mxu0 0
      %329 = vmatprep.subr.bf16.mxu0 0
      %330 = vmatpush2.bf16.msra.mxu0 0
      %331 = vmatprep.subr.bf16.mxu0 0
      %332 = vmatpush2.bf16.msra.mxu0 0
      %333 = vmatprep.subr.bf16.mxu0 0
      %334 = vmatpush2.bf16.msra.mxu0 0
      %335 = vmatprep.subr.bf16.mxu0 0
      %336 = vmatpush2.bf16.msra.mxu0 0
      %337 = vmatprep.subr.bf16.mxu0 0
      %338 = vmatpush2.bf16.msra.mxu0 0
      %339 = vmatprep.subr.bf16.mxu0 0
      %340 = vmatpush2.bf16.msra.mxu0 0
      %341 = vmatprep.mubr.bf16.mxu0 0
      %342 = vmatmul.mubr.bf16.gmra.mxu0 %v304
      %v343 = vpop.f32.mrf.mxu0
      %v344 = vadd.f32 0.0, %v343
      %v345 = vpop.f32.mrf.mxu0
      %v346 = vpop.f32.mrf.mxu0
      %v347 = vpop.f32.mrf.mxu0
      %348 = vdwg.mxu0
      %349 = vrot.lane.b32.xlu0 %v119, 96
      %v350 = vpop.permute.xlu0 %349
      %351 = vrot.lane.b32.xlu0 %v122, 32
      %v352 = vpop.permute.xlu0 %351
      %v354 = vsel %vm125, %v350, 0
      %v357 = vsel %vm125, %v352, 0
      %359 = vmatprep.subr.bf16.mxu0 0
      %360 = vmatpush1.bf16.xpose.msra.mxu0 0
      %361 = vmatprep.subr.bf16.mxu0 0
      %362 = vmatpush1.bf16.xpose.msra.mxu0 0
      %363 = vmatprep.subr.bf16.mxu0 0
      %364 = vmatpush1.bf16.xpose.msra.mxu0 0
      %365 = vmatprep.subr.bf16.mxu0 0
      %366 = vmatpush1.bf16.xpose.msra.mxu0 0
      %367 = vmatprep.subr.bf16.mxu0 0
      %368 = vmatpush1.bf16.xpose.msra.mxu0 0
      %369 = vmatprep.subr.bf16.mxu0 0
      %370 = vmatpush1.bf16.xpose.msra.mxu0 0
      %371 = vmatprep.subr.bf16.mxu0 0
      %372 = vmatpush1.bf16.xpose.msra.mxu0 0
      %373 = vmatprep.subr.bf16.mxu0 0
      %374 = vmatpush1.bf16.xpose.msra.mxu0 %v357
      %375 = vmatprep.subr.bf16.mxu0 0
      %376 = vmatpush2.bf16.xpose.msra.mxu0 0
      %377 = vmatprep.subr.bf16.mxu0 0
      %378 = vmatpush2.bf16.xpose.msra.mxu0 0
      %379 = vmatprep.subr.bf16.mxu0 0
      %380 = vmatpush2.bf16.xpose.msra.mxu0 0
      %381 = vmatprep.subr.bf16.mxu0 0
      %382 = vmatpush2.bf16.xpose.msra.mxu0 0
      %383 = vmatprep.subr.bf16.mxu0 0
      %384 = vmatpush2.bf16.xpose.msra.mxu0 0
      %385 = vmatprep.subr.bf16.mxu0 0
      %386 = vmatpush2.bf16.xpose.msra.mxu0 0
      %387 = vmatprep.subr.bf16.mxu0 0
      %388 = vmatpush2.bf16.xpose.msra.mxu0 0
      %389 = vmatprep.subr.bf16.mxu0 0
      %390 = vmatpush2.bf16.xpose.msra.mxu0 0
      %391 = vmatprep.mubr.bf16.mxu0 0
      %392 = vmatmul.mubr.bf16.gmra.mxu0 %v354
      %v393 = vpop.f32.mrf.mxu0
      %v394 = vadd.f32 0.0, %v393
      %v395 = vpop.f32.mrf.mxu0
      %v396 = vpop.f32.mrf.mxu0
      %v397 = vpop.f32.mrf.mxu0
      %398 = vdwg.mxu0
      %v399 = vsel %vm172, %v394, -inf
      %400 = vmax.xlane.f32.xlu0 %v399
      %v401 = vpop.xlane.xlu0 %400
      %v402 = vsub.f32 %v394, %v401
      %v403 = vmul.f32 %v402, 1.442695
      %v404 = vpow.pop %v403
      %v405 = vsel %vm172, %v404, 0.0
      %406 = vadd.xlane.f32.xlu0 %v405
      %v407 = vpop.xlane.xlu0 %406
      %v408 = vrcp.pop %v407
      %v409 = vmul.f32 %v404, %v408
      %v410 = vpack.c.bf16 %v409, %v409
      %411 = vrot.lane.b32.xlu0 %v186, 96
      %v412 = vpop.permute.xlu0 %411
      %v414 = vsel %vm187, %v410, 0
      %v417 = vand.u32 %v412, %v194
      %419 = vmatprep.subr.bf16.mxu0 0
      %420 = vmatpush1.bf16.msra.mxu0 0
      %421 = vmatprep.subr.bf16.mxu0 0
      %422 = vmatpush1.bf16.msra.mxu0 0
      %423 = vmatprep.subr.bf16.mxu0 0
      %424 = vmatpush1.bf16.msra.mxu0 0
      %425 = vmatprep.subr.bf16.mxu0 0
      %426 = vmatpush1.bf16.msra.mxu0 0
      %427 = vmatprep.subr.bf16.mxu0 0
      %428 = vmatpush1.bf16.msra.mxu0 0
      %429 = vmatprep.subr.bf16.mxu0 0
      %430 = vmatpush1.bf16.msra.mxu0 0
      %431 = vmatprep.subr.bf16.mxu0 0
      %432 = vmatpush1.bf16.msra.mxu0 0
      %433 = vmatprep.subr.bf16.mxu0 0
      %434 = vmatpush1.bf16.msra.mxu0 %v417
      %435 = vmatprep.subr.bf16.mxu0 0
      %436 = vmatpush2.bf16.msra.mxu0 0
      %437 = vmatprep.subr.bf16.mxu0 0
      %438 = vmatpush2.bf16.msra.mxu0 0
      %439 = vmatprep.subr.bf16.mxu0 0
      %440 = vmatpush2.bf16.msra.mxu0 0
      %441 = vmatprep.subr.bf16.mxu0 0
      %442 = vmatpush2.bf16.msra.mxu0 0
      %443 = vmatprep.subr.bf16.mxu0 0
      %444 = vmatpush2.bf16.msra.mxu0 0
      %445 = vmatprep.subr.bf16.mxu0 0
      %446 = vmatpush2.bf16.msra.mxu0 0
      %447 = vmatprep.subr.bf16.mxu0 0
      %448 = vmatpush2.bf16.msra.mxu0 0
      %449 = vmatprep.subr.bf16.mxu0 0
      %450 = vmatpush2.bf16.msra.mxu0 0
      %451 = vmatprep.mubr.bf16.mxu0 0
      %452 = vmatmul.mubr.bf16.gmra.mxu0 %v414
      %v453 = vpop.f32.mrf.mxu0
      %v454 = vadd.f32 0.0, %v453
      %v455 = vpop.f32.mrf.mxu0
      %v456 = vpop.f32.mrf.mxu0
      %v457 = vpop.f32.mrf.mxu0
      %458 = vdwg.mxu0
      %459 = vrot.lane.b32.xlu0 %v119, 80
      %v460 = vpop.permute.xlu0 %459
      %461 = vrot.lane.b32.xlu0 %v122, 16
      %v462 = vpop.permute.xlu0 %461
      %v464 = vsel %vm125, %v460, 0
      %v467 = vsel %vm125, %v462, 0
      %469 = vmatprep.subr.bf16.mxu0 0
      %470 = vmatpush1.bf16.xpose.msra.mxu0 0
      %471 = vmatprep.subr.bf16.mxu0 0
      %472 = vmatpush1.bf16.xpose.msra.mxu0 0
      %473 = vmatprep.subr.bf16.mxu0 0
      %474 = vmatpush1.bf16.xpose.msra.mxu0 0
      %475 = vmatprep.subr.bf16.mxu0 0
      %476 = vmatpush1.bf16.xpose.msra.mxu0 0
      %477 = vmatprep.subr.bf16.mxu0 0
      %478 = vmatpush1.bf16.xpose.msra.mxu0 0
      %479 = vmatprep.subr.bf16.mxu0 0
      %480 = vmatpush1.bf16.xpose.msra.mxu0 0
      %481 = vmatprep.subr.bf16.mxu0 0
      %482 = vmatpush1.bf16.xpose.msra.mxu0 0
      %483 = vmatprep.subr.bf16.mxu0 0
      %484 = vmatpush1.bf16.xpose.msra.mxu0 %v467
      %485 = vmatprep.subr.bf16.mxu0 0
      %486 = vmatpush2.bf16.xpose.msra.mxu0 0
      %487 = vmatprep.subr.bf16.mxu0 0
      %488 = vmatpush2.bf16.xpose.msra.mxu0 0
      %489 = vmatprep.subr.bf16.mxu0 0
      %490 = vmatpush2.bf16.xpose.msra.mxu0 0
      %491 = vmatprep.subr.bf16.mxu0 0
      %492 = vmatpush2.bf16.xpose.msra.mxu0 0
      %493 = vmatprep.subr.bf16.mxu0 0
      %494 = vmatpush2.bf16.xpose.msra.mxu0 0
      %495 = vmatprep.subr.bf16.mxu0 0
      %496 = vmatpush2.bf16.xpose.msra.mxu0 0
      %497 = vmatprep.subr.bf16.mxu0 0
      %498 = vmatpush2.bf16.xpose.msra.mxu0 0
      %499 = vmatprep.subr.bf16.mxu0 0
      %500 = vmatpush2.bf16.xpose.msra.mxu0 0
      %501 = vmatprep.mubr.bf16.mxu0 0
      %502 = vmatmul.mubr.bf16.gmra.mxu0 %v464
      %v503 = vpop.f32.mrf.mxu0
      %v504 = vadd.f32 0.0, %v503
      %v505 = vpop.f32.mrf.mxu0
      %v506 = vpop.f32.mrf.mxu0
      %v507 = vpop.f32.mrf.mxu0
      %508 = vdwg.mxu0
      %v509 = vsel %vm172, %v504, -inf
      %510 = vmax.xlane.f32.xlu0 %v509
      %v511 = vpop.xlane.xlu0 %510
      %v512 = vsub.f32 %v504, %v511
      %v513 = vmul.f32 %v512, 1.442695
      %v514 = vpow.pop %v513
      %v515 = vsel %vm172, %v514, 0.0
      %516 = vadd.xlane.f32.xlu0 %v515
      %v517 = vpop.xlane.xlu0 %516
      %v518 = vrcp.pop %v517
      %v519 = vmul.f32 %v514, %v518
      %v520 = vpack.c.bf16 %v519, %v519
      %521 = vrot.lane.b32.xlu0 %v186, 80
      %v522 = vpop.permute.xlu0 %521
      %v524 = vsel %vm187, %v520, 0
      %v527 = vand.u32 %v522, %v194
      %529 = vmatprep.subr.bf16.mxu0 0
      %530 = vmatpush1.bf16.msra.mxu0 0
      %531 = vmatprep.subr.bf16.mxu0 0
      %532 = vmatpush1.bf16.msra.mxu0 0
      %533 = vmatprep.subr.bf16.mxu0 0
      %534 = vmatpush1.bf16.msra.mxu0 0
      %535 = vmatprep.subr.bf16.mxu0 0
      %536 = vmatpush1.bf16.msra.mxu0 0
      %537 = vmatprep.subr.bf16.mxu0 0
      %538 = vmatpush1.bf16.msra.mxu0 0
      %539 = vmatprep.subr.bf16.mxu0 0
      %540 = vmatpush1.bf16.msra.mxu0 0
      %541 = vmatprep.subr.bf16.mxu0 0
      %542 = vmatpush1.bf16.msra.mxu0 0
      %543 = vmatprep.subr.bf16.mxu0 0
      %544 = vmatpush1.bf16.msra.mxu0 %v527
      %545 = vmatprep.subr.bf16.mxu0 0
      %546 = vmatpush2.bf16.msra.mxu0 0
      %547 = vmatprep.subr.bf16.mxu0 0
      %548 = vmatpush2.bf16.msra.mxu0 0
      %549 = vmatprep.subr.bf16.mxu0 0
      %550 = vmatpush2.bf16.msra.mxu0 0
      %551 = vmatprep.subr.bf16.mxu0 0
      %552 = vmatpush2.bf16.msra.mxu0 0
      %553 = vmatprep.subr.bf16.mxu0 0
      %554 = vmatpush2.bf16.msra.mxu0 0
      %555 = vmatprep.subr.bf16.mxu0 0
      %556 = vmatpush2.bf16.msra.mxu0 0
      %557 = vmatprep.subr.bf16.mxu0 0
      %558 = vmatpush2.bf16.msra.mxu0 0
      %559 = vmatprep.subr.bf16.mxu0 0
      %560 = vmatpush2.bf16.msra.mxu0 0
      %561 = vmatprep.mubr.bf16.mxu0 0
      %562 = vmatmul.mubr.bf16.gmra.mxu0 %v524
      %v563 = vpop.f32.mrf.mxu0
      %v564 = vadd.f32 0.0, %v563
      %v565 = vpop.f32.mrf.mxu0
      %v566 = vpop.f32.mrf.mxu0
      %v567 = vpop.f32.mrf.mxu0
      %568 = vdwg.mxu0
      %570 = vrot.lane.b32.xlu0 %v344, 16
      %v571 = vpop.permute.xlu0 %570
      %574 = vrot.lane.b32.xlu0 %v454, 32
      %v575 = vpop.permute.xlu0 %574
      %578 = vrot.lane.b32.xlu0 %v564, 48
      %v579 = vpop.permute.xlu0 %578
      %v581 = vsel %vm125, %v233, %v571
      %vm582 = vcmask 261120
      %v583 = vsel %vm582, %v581, %v575
      %vm584 = vcmask 392192
      %v585 = vsel %vm584, %v583, %v579
      %vm586 = vcmask 520192
      %587 = vst.msk [vmem:[%s114] sm:$0x1f] %vm586, %v585
      %p588 = scmp.lt.s32.totalorder %s12, 1
      %s589 = scalar_select %p588, %s12, 1
      %s590 = smul.addr %s589, 8
      %s591 = scalar_lea.vmem %s1, %s590
      // Predicated region
      $region25: #{_lambda_.14} parent=23 // pred_check
        %p592 = pneg %p56
      $region26: #{_lambda_.14} parent=23 // pred_check_branch
        %594 = sbr.rel (%p592) target = $region28
      $region27: #{_lambda_.14} parent=23 // pred_region
        _
      $region28: #{_lambda_.14} parent=23 // pred_fallthru
        _
    $region24: #{_lambda_.14} parent=5 // pred_fallthru
      _
    %p595 = scmp.le.s32.totalorder 2, %s7
    // Predicated region
    $region29: #{_lambda_.14} parent=5 // pred_check
      %p596 = pneg %p595
    $region30: #{_lambda_.14} parent=5 // pred_check_branch
      %598 = sbr.rel (%p596) target = $region32
    $region31: #{_lambda_.14} parent=5 // pred_region
      %s599 = ssub.s32 %s7, 2
      // Predicated region
      $region33: #{_lambda_.14} parent=31 // pred_check
        %p600 = pneg %p62
      $region34: #{_lambda_.14} parent=31 // pred_check_branch
        %602 = sbr.rel (%p600) target = $region36
      $region35: #{_lambda_.14} parent=31 // pred_region
        %p603 = scmp.lt.s32.totalorder %s13, 1
        %s604 = scalar_select %p603, %s13, 1
        %s605 = smul.addr %s604, 8
        %s606 = scalar_lea.vmem %s1, %s605
      $region36: #{_lambda_.14} parent=31 // pred_fallthru
        _
    $region32: #{_lambda_.14} parent=5 // pred_fallthru
      _
  $region6: #{_lambda_.14} parent=0 // loop_footer
    %s11 = sadd.s32 1, %s7
  $region7: #{_lambda_.14} parent=0 // loop_footer_branch
    %6 = sbr.rel target = $region3
  $region8: #{_lambda_.14} parent=0 // loop_exit
    _

// kernel: _lambda_.12
$region0: #{_lambda_.12}
  #allocation0 [shape = 'u32[]', space=smem, size = 0x4, offset = 0x4, fixed_abs, tag = 'smem constant byte address 0x4 - core index']
  #allocation1 [shape = 'u32[144,128]{1,0:T(1,128)}', space=vmem, size = 0x12000, scoped, tag = 'internal scratch']
  %s0 = inlined_call_operand.vmem [shape: f32[8,768], index: 0, kind: input, shape index: {}]
  %s1 = inlined_call_operand.vmem [shape: bf16[768,64], index: 1, kind: input, shape index: {}]
  %s2 = inlined_call_operand.vmem [shape: f32[1,64], index: 2, kind: input, shape index: {}]
  %s3 = inlined_call_operand.vmem [shape: f32[8,64], index: 3, kind: input, shape index: {}]
  %s4 = inlined_call_operand.vmem [shape: f32[8,64], index: 4, kind: output, shape index: {}]
  %s5 = sld [smem:[#allocation0]]
  $region26: #{_lambda_.12} parent=0
    _
  %s7 = ssub.s32 1, %s5
  %s8 = scalar_select 0, %s7, %s5
  // Predicated region
  $region2: #{_lambda_.12} parent=0 // pred_check
    _
  $region3: #{_lambda_.12} parent=0 // pred_check_branch
    %10 = sbr.rel (0) target = $region5
  $region4: #{_lambda_.12} parent=0 // pred_region
    _
  $region5: #{_lambda_.12} parent=0 // pred_fallthru
    _
  // Predicated region
  $region6: #{_lambda_.12} parent=0 // pred_check
    _
  $region7: #{_lambda_.12} parent=0 // pred_check_branch
    %12 = sbr.rel (0) target = $region9
  $region8: #{_lambda_.12} parent=0 // pred_region
    _
  $region9: #{_lambda_.12} parent=0 // pred_fallthru
    _
  // Predicated region
  $region10: #{_lambda_.12} parent=0 // pred_check
    _
  $region11: #{_lambda_.12} parent=0 // pred_check_branch
    %14 = sbr.rel (0) target = $region13
  $region12: #{_lambda_.12} parent=0 // pred_region
    _
  $region13: #{_lambda_.12} parent=0 // pred_fallthru
    _
  // Predicated region
  $region14: #{_lambda_.12} parent=0 // pred_check
    _
  $region15: #{_lambda_.12} parent=0 // pred_check_branch
    %16 = sbr.rel (0) target = $region17
  $region16: #{_lambda_.12} parent=0 // pred_region
    _
  $region17: #{_lambda_.12} parent=0 // pred_fallthru
    _
  %v18 = vld [vmem:[%s0] sm:$0xff]
  %v19 = vld [vmem:[%s0 + $0x8] sm:$0xff]
  %v20 = vld [vmem:[%s0 + $0x10] sm:$0xff]
  %v21 = vld [vmem:[%s0 + $0x18] sm:$0xff]
  %v22 = vld [vmem:[%s0 + $0x20] sm:$0xff]
  %v23 = vld [vmem:[%s0 + $0x28] sm:$0xff]
  %v24 = vpack.c.bf16 %v18, %v18
  %v25 = vpack.c.bf16 %v19, %v19
  %v26 = vpack.c.bf16 %v20, %v20
  %v27 = vpack.c.bf16 %v21, %v21
  %v28 = vpack.c.bf16 %v22, %v22
  %v29 = vpack.c.bf16 %v23, %v23
  %v30 = vld [vmem:[%s1] sm:$0xf]
  %v31 = vld [vmem:[%s1 + $0x4] sm:$0xf]
  %v32 = vld [vmem:[%s1 + $0x8] sm:$0xf]
  %v33 = vld [vmem:[%s1 + $0xc] sm:$0xf]
  %v34 = vld [vmem:[%s1 + $0x10] sm:$0xf]
  %v35 = vld [vmem:[%s1 + $0x14] sm:$0xf]
  %v36 = vld [vmem:[%s1 + $0x18] sm:$0xf]
  %v37 = vld [vmem:[%s1 + $0x1c] sm:$0xf]
  %v38 = vld [vmem:[%s1 + $0x20] sm:$0xf]
  %v39 = vld [vmem:[%s1 + $0x24] sm:$0xf]
  %v40 = vld [vmem:[%s1 + $0x28] sm:$0xf]
  %v41 = vld [vmem:[%s1 + $0x2c] sm:$0xf]
  %v42 = vld [vmem:[%s1 + $0x30] sm:$0xf]
  %v43 = vld [vmem:[%s1 + $0x34] sm:$0xf]
  %v44 = vld [vmem:[%s1 + $0x38] sm:$0xf]
  %v45 = vld [vmem:[%s1 + $0x3c] sm:$0xf]
  %v46 = vld [vmem:[%s1 + $0x40] sm:$0xf]
  %v47 = vld [vmem:[%s1 + $0x44] sm:$0xf]
  %v48 = vld [vmem:[%s1 + $0x48] sm:$0xf]
  %v49 = vld [vmem:[%s1 + $0x4c] sm:$0xf]
  %v50 = vld [vmem:[%s1 + $0x50] sm:$0xf]
  %v51 = vld [vmem:[%s1 + $0x54] sm:$0xf]
  %v52 = vld [vmem:[%s1 + $0x58] sm:$0xf]
  %v53 = vld [vmem:[%s1 + $0x5c] sm:$0xf]
  %v54 = vld [vmem:[%s1 + $0x60] sm:$0xf]
  %v55 = vld [vmem:[%s1 + $0x64] sm:$0xf]
  %v56 = vld [vmem:[%s1 + $0x68] sm:$0xf]
  %v57 = vld [vmem:[%s1 + $0x6c] sm:$0xf]
  %v58 = vld [vmem:[%s1 + $0x70] sm:$0xf]
  %v59 = vld [vmem:[%s1 + $0x74] sm:$0xf]
  %v60 = vld [vmem:[%s1 + $0x78] sm:$0xf]
  %v61 = vld [vmem:[%s1 + $0x7c] sm:$0xf]
  %v62 = vld [vmem:[%s1 + $0x80] sm:$0xf]
  %v63 = vld [vmem:[%s1 + $0x84] sm:$0xf]
  %v64 = vld [vmem:[%s1 + $0x88] sm:$0xf]
  %v65 = vld [vmem:[%s1 + $0x8c] sm:$0xf]
  %v66 = vld [vmem:[%s1 + $0x90] sm:$0xf]
  %v67 = vld [vmem:[%s1 + $0x94] sm:$0xf]
  %v68 = vld [vmem:[%s1 + $0x98] sm:$0xf]
  %v69 = vld [vmem:[%s1 + $0x9c] sm:$0xf]
  %v70 = vld [vmem:[%s1 + $0xa0] sm:$0xf]
  %v71 = vld [vmem:[%s1 + $0xa4] sm:$0xf]
  %v72 = vld [vmem:[%s1 + $0xa8] sm:$0xf]
  %v73 = vld [vmem:[%s1 + $0xac] sm:$0xf]
  %v74 = vld [vmem:[%s1 + $0xb0] sm:$0xf]
  %v75 = vld [vmem:[%s1 + $0xb4] sm:$0xf]
  %v76 = vld [vmem:[%s1 + $0xb8] sm:$0xf]
  %v77 = vld [vmem:[%s1 + $0xbc] sm:$0xf]
  %v78 = vld [vmem:[%s1 + $0xc0] sm:$0xf]
  %v79 = vld [vmem:[%s1 + $0xc4] sm:$0xf]
  %v80 = vld [vmem:[%s1 + $0xc8] sm:$0xf]
  %v81 = vld [vmem:[%s1 + $0xcc] sm:$0xf]
  %v82 = vld [vmem:[%s1 + $0xd0] sm:$0xf]
  %v83 = vld [vmem:[%s1 + $0xd4] sm:$0xf]
  %v84 = vld [vmem:[%s1 + $0xd8] sm:$0xf]
  %v85 = vld [vmem:[%s1 + $0xdc] sm:$0xf]
  %v86 = vld [vmem:[%s1 + $0xe0] sm:$0xf]
  %v87 = vld [vmem:[%s1 + $0xe4] sm:$0xf]
  %v88 = vld [vmem:[%s1 + $0xe8] sm:$0xf]
  %v89 = vld [vmem:[%s1 + $0xec] sm:$0xf]
  %v90 = vld [vmem:[%s1 + $0xf0] sm:$0xf]
  %v91 = vld [vmem:[%s1 + $0xf4] sm:$0xf]
  %v92 = vld [vmem:[%s1 + $0xf8] sm:$0xf]
  %v93 = vld [vmem:[%s1 + $0xfc] sm:$0xf]
  %v94 = vld [vmem:[%s1 + $0x100] sm:$0xf]
  %v95 = vld [vmem:[%s1 + $0x104] sm:$0xf]
  %v96 = vld [vmem:[%s1 + $0x108] sm:$0xf]
  %v97 = vld [vmem:[%s1 + $0x10c] sm:$0xf]
  %v98 = vld [vmem:[%s1 + $0x110] sm:$0xf]
  %v99 = vld [vmem:[%s1 + $0x114] sm:$0xf]
  %v100 = vld [vmem:[%s1 + $0x118] sm:$0xf]
  %v101 = vld [vmem:[%s1 + $0x11c] sm:$0xf]
  %v102 = vld [vmem:[%s1 + $0x120] sm:$0xf]
  %v103 = vld [vmem:[%s1 + $0x124] sm:$0xf]
  %v104 = vld [vmem:[%s1 + $0x128] sm:$0xf]
  %v105 = vld [vmem:[%s1 + $0x12c] sm:$0xf]
  %v106 = vld [vmem:[%s1 + $0x130] sm:$0xf]
  %v107 = vld [vmem:[%s1 + $0x134] sm:$0xf]
  %v108 = vld [vmem:[%s1 + $0x138] sm:$0xf]
  %v109 = vld [vmem:[%s1 + $0x13c] sm:$0xf]
  %v110 = vld [vmem:[%s1 + $0x140] sm:$0xf]
  %v111 = vld [vmem:[%s1 + $0x144] sm:$0xf]
  %v112 = vld [vmem:[%s1 + $0x148] sm:$0xf]
  %v113 = vld [vmem:[%s1 + $0x14c] sm:$0xf]
  %v114 = vld [vmem:[%s1 + $0x150] sm:$0xf]
  %v115 = vld [vmem:[%s1 + $0x154] sm:$0xf]
  %v116 = vld [vmem:[%s1 + $0x158] sm:$0xf]
  %v117 = vld [vmem:[%s1 + $0x15c] sm:$0xf]
  %v118 = vld [vmem:[%s1 + $0x160] sm:$0xf]
  %v119 = vld [vmem:[%s1 + $0x164] sm:$0xf]
  %v120 = vld [vmem:[%s1 + $0x168] sm:$0xf]
  %v121 = vld [vmem:[%s1 + $0x16c] sm:$0xf]
  %v122 = vld [vmem:[%s1 + $0x170] sm:$0xf]
  %v123 = vld [vmem:[%s1 + $0x174] sm:$0xf]
  %v124 = vld [vmem:[%s1 + $0x178] sm:$0xf]
  %v125 = vld [vmem:[%s1 + $0x17c] sm:$0xf]
  %v126 = vld [vmem:[%s2] sm:$0x1]
  %v128 = vlaneseq
  %v129 = vshrl.u32 %v128, 7
  %v130 = vsub.s32 0, %v129
  %v131 = vrot.slane %v126, %v130
  %v229 = vunpack.c.l.b16 %v30
  %v230 = vunpack.c.l.b16 %v31
  %v231 = vunpack.c.l.b16 %v32
  %v232 = vunpack.c.l.b16 %v33
  %v233 = vunpack.c.l.b16 %v34
  %v234 = vunpack.c.l.b16 %v35
  %v235 = vunpack.c.l.b16 %v36
  %v236 = vunpack.c.l.b16 %v37
  %v237 = vunpack.c.l.b16 %v38
  %v238 = vunpack.c.l.b16 %v39
  %v239 = vunpack.c.l.b16 %v40
  %v240 = vunpack.c.l.b16 %v41
  %v241 = vunpack.c.l.b16 %v42
  %v242 = vunpack.c.l.b16 %v43
  %v243 = vunpack.c.l.b16 %v44
  %v244 = vunpack.c.l.b16 %v45
  %v245 = vunpack.c.l.b16 %v46
  %v246 = vunpack.c.l.b16 %v47
  %v247 = vunpack.c.l.b16 %v48
  %v248 = vunpack.c.l.b16 %v49
  %v249 = vunpack.c.l.b16 %v50
  %v250 = vunpack.c.l.b16 %v51
  %v251 = vunpack.c.l.b16 %v52
  %v252 = vunpack.c.l.b16 %v53
  %v253 = vunpack.c.l.b16 %v54
  %v254 = vunpack.c.l.b16 %v55
  %v255 = vunpack.c.l.b16 %v56
  %v256 = vunpack.c.l.b16 %v57
  %v257 = vunpack.c.l.b16 %v58
  %v258 = vunpack.c.l.b16 %v59
  %v259 = vunpack.c.l.b16 %v60
  %v260 = vunpack.c.l.b16 %v61
  %v261 = vunpack.c.l.b16 %v62
  %v262 = vunpack.c.l.b16 %v63
  %v263 = vunpack.c.l.b16 %v64
  %v264 = vunpack.c.l.b16 %v65
  %v265 = vunpack.c.l.b16 %v66
  %v266 = vunpack.c.l.b16 %v67
  %v267 = vunpack.c.l.b16 %v68
  %v268 = vunpack.c.l.b16 %v69
  %v269 = vunpack.c.l.b16 %v70
  %v270 = vunpack.c.l.b16 %v71
  %v271 = vunpack.c.l.b16 %v72
  %v272 = vunpack.c.l.b16 %v73
  %v273 = vunpack.c.l.b16 %v74
  %v274 = vunpack.c.l.b16 %v75
  %v275 = vunpack.c.l.b16 %v76
  %v276 = vunpack.c.l.b16 %v77
  %v277 = vunpack.c.l.b16 %v78
  %v278 = vunpack.c.l.b16 %v79
  %v279 = vunpack.c.l.b16 %v80
  %v280 = vunpack.c.l.b16 %v81
  %v281 = vunpack.c.l.b16 %v82
  %v282 = vunpack.c.l.b16 %v83
  %v283 = vunpack.c.l.b16 %v84
  %v284 = vunpack.c.l.b16 %v85
  %v285 = vunpack.c.l.b16 %v86
  %v286 = vunpack.c.l.b16 %v87
  %v287 = vunpack.c.l.b16 %v88
  %v288 = vunpack.c.l.b16 %v89
  %v289 = vunpack.c.l.b16 %v90
  %v290 = vunpack.c.l.b16 %v91
  %v291 = vunpack.c.l.b16 %v92
  %v292 = vunpack.c.l.b16 %v93
  %v293 = vunpack.c.l.b16 %v94
  %v294 = vunpack.c.l.b16 %v95
  %v295 = vunpack.c.l.b16 %v96
  %v296 = vunpack.c.l.b16 %v97
  %v297 = vunpack.c.l.b16 %v98
  %v298 = vunpack.c.l.b16 %v99
  %v299 = vunpack.c.l.b16 %v100
  %v300 = vunpack.c.l.b16 %v101
  %v301 = vunpack.c.l.b16 %v102
  %v302 = vunpack.c.l.b16 %v103
  %v303 = vunpack.c.l.b16 %v104
  %v304 = vunpack.c.l.b16 %v105
  %v305 = vunpack.c.l.b16 %v106
  %v306 = vunpack.c.l.b16 %v107
  %v307 = vunpack.c.l.b16 %v108
  %v308 = vunpack.c.l.b16 %v109
  %v309 = vunpack.c.l.b16 %v110
  %v310 = vunpack.c.l.b16 %v111
  %v311 = vunpack.c.l.b16 %v112
  %v312 = vunpack.c.l.b16 %v113
  %v313 = vunpack.c.l.b16 %v114
  %v314 = vunpack.c.l.b16 %v115
  %v315 = vunpack.c.l.b16 %v116
  %v316 = vunpack.c.l.b16 %v117
  %v317 = vunpack.c.l.b16 %v118
  %v318 = vunpack.c.l.b16 %v119
  %v319 = vunpack.c.l.b16 %v120
  %v320 = vunpack.c.l.b16 %v121
  %v321 = vunpack.c.l.b16 %v122
  %v322 = vunpack.c.l.b16 %v123
  %v323 = vunpack.c.l.b16 %v124
  %v324 = vunpack.c.l.b16 %v125
  %v325 = vpack.c.b16 %v230, %v229
  %v326 = vpack.c.b16 %v232, %v231
  %v327 = vpack.c.b16 %v234, %v233
  %v328 = vpack.c.b16 %v236, %v235
  %v329 = vpack.c.b16 %v238, %v237
  %v330 = vpack.c.b16 %v240, %v239
  %v331 = vpack.c.b16 %v242, %v241
  %v332 = vpack.c.b16 %v244, %v243
  %v333 = vpack.c.b16 %v246, %v245
  %v334 = vpack.c.b16 %v248, %v247
  %v335 = vpack.c.b16 %v250, %v249
  %v336 = vpack.c.b16 %v252, %v251
  %v337 = vpack.c.b16 %v254, %v253
  %v338 = vpack.c.b16 %v256, %v255
  %v339 = vpack.c.b16 %v258, %v257
  %v340 = vpack.c.b16 %v260, %v259
  %v341 = vpack.c.b16 %v262, %v261
  %v342 = vpack.c.b16 %v264, %v263
  %v343 = vpack.c.b16 %v266, %v265
  %v344 = vpack.c.b16 %v268, %v267
  %v345 = vpack.c.b16 %v270, %v269
  %v346 = vpack.c.b16 %v272, %v271
  %v347 = vpack.c.b16 %v274, %v273
  %v348 = vpack.c.b16 %v276, %v275
  %v349 = vpack.c.b16 %v278, %v277
  %v350 = vpack.c.b16 %v280, %v279
  %v351 = vpack.c.b16 %v282, %v281
  %v352 = vpack.c.b16 %v284, %v283
  %v353 = vpack.c.b16 %v286, %v285
  %v354 = vpack.c.b16 %v288, %v287
  %v355 = vpack.c.b16 %v290, %v289
  %v356 = vpack.c.b16 %v292, %v291
  %v357 = vpack.c.b16 %v294, %v293
  %v358 = vpack.c.b16 %v296, %v295
  %v359 = vpack.c.b16 %v298, %v297
  %v360 = vpack.c.b16 %v300, %v299
  %v361 = vpack.c.b16 %v302, %v301
  %v362 = vpack.c.b16 %v304, %v303
  %v363 = vpack.c.b16 %v306, %v305
  %v364 = vpack.c.b16 %v308, %v307
  %v365 = vpack.c.b16 %v310, %v309
  %v366 = vpack.c.b16 %v312, %v311
  %v367 = vpack.c.b16 %v314, %v313
  %v368 = vpack.c.b16 %v316, %v315
  %v369 = vpack.c.b16 %v318, %v317
  %v370 = vpack.c.b16 %v320, %v319
  %v371 = vpack.c.b16 %v322, %v321
  %v372 = vpack.c.b16 %v324, %v323
  %421 = vmatprep.subr.bf16.mxu0 0
  %422 = vmatpush1.bf16.msra.mxu0 %v332
  %423 = vmatprep.subr.bf16.mxu0 0
  %424 = vmatpush1.bf16.msra.mxu0 %v331
  %425 = vmatprep.subr.bf16.mxu0 0
  %426 = vmatpush1.bf16.msra.mxu0 %v330
  %427 = vmatprep.subr.bf16.mxu0 0
  %428 = vmatpush1.bf16.msra.mxu0 %v329
  %429 = vmatprep.subr.bf16.mxu0 0
  %430 = vmatpush1.bf16.msra.mxu0 %v328
  %431 = vmatprep.subr.bf16.mxu0 0
  %432 = vmatpush1.bf16.msra.mxu0 %v327
  %433 = vmatprep.subr.bf16.mxu0 0
  %434 = vmatpush1.bf16.msra.mxu0 %v326
  %435 = vmatprep.subr.bf16.mxu0 0
  %436 = vmatpush1.bf16.msra.mxu0 %v325
  %437 = vmatprep.subr.bf16.mxu0 0
  %438 = vmatpush2.bf16.msra.mxu0 %v340
  %439 = vmatprep.subr.bf16.mxu0 0
  %440 = vmatpush2.bf16.msra.mxu0 %v339
  %441 = vmatprep.subr.bf16.mxu0 0
  %442 = vmatpush2.bf16.msra.mxu0 %v338
  %443 = vmatprep.subr.bf16.mxu0 0
  %444 = vmatpush2.bf16.msra.mxu0 %v337
  %445 = vmatprep.subr.bf16.mxu0 0
  %446 = vmatpush2.bf16.msra.mxu0 %v336
  %447 = vmatprep.subr.bf16.mxu0 0
  %448 = vmatpush2.bf16.msra.mxu0 %v335
  %449 = vmatprep.subr.bf16.mxu0 0
  %450 = vmatpush2.bf16.msra.mxu0 %v334
  %451 = vmatprep.subr.bf16.mxu0 0
  %452 = vmatpush2.bf16.msra.mxu0 %v333
  %453 = vmatprep.mubr.bf16.mxu0 %v25
  %454 = vmatmul.mubr.bf16.gmra.mxu0 %v24
  %v455 = vpop.f32.mrf.mxu0
  %v456 = vadd.f32 %v131, %v455
  %v457 = vpop.f32.mrf.mxu0
  %v458 = vpop.f32.mrf.mxu0
  %v459 = vpop.f32.mrf.mxu0
  %460 = vdwg.mxu0
  %461 = vmatprep.subr.bf16.mxu0 0
  %462 = vmatpush1.bf16.msra.mxu0 %v348
  %463 = vmatprep.subr.bf16.mxu0 0
  %464 = vmatpush1.bf16.msra.mxu0 %v347
  %465 = vmatprep.subr.bf16.mxu0 0
  %466 = vmatpush1.bf16.msra.mxu0 %v346
  %467 = vmatprep.subr.bf16.mxu0 0
  %468 = vmatpush1.bf16.msra.mxu0 %v345
  %469 = vmatprep.subr.bf16.mxu0 0
  %470 = vmatpush1.bf16.msra.mxu0 %v344
  %471 = vmatprep.subr.bf16.mxu0 0
  %472 = vmatpush1.bf16.msra.mxu0 %v343
  %473 = vmatprep.subr.bf16.mxu0 0
  %474 = vmatpush1.bf16.msra.mxu0 %v342
  %475 = vmatprep.subr.bf16.mxu0 0
  %476 = vmatpush1.bf16.msra.mxu0 %v341
  %477 = vmatprep.subr.bf16.mxu0 0
  %478 = vmatpush2.bf16.msra.mxu0 %v356
  %479 = vmatprep.subr.bf16.mxu0 0
  %480 = vmatpush2.bf16.msra.mxu0 %v355
  %481 = vmatprep.subr.bf16.mxu0 0
  %482 = vmatpush2.bf16.msra.mxu0 %v354
  %483 = vmatprep.subr.bf16.mxu0 0
  %484 = vmatpush2.bf16.msra.mxu0 %v353
  %485 = vmatprep.subr.bf16.mxu0 0
  %486 = vmatpush2.bf16.msra.mxu0 %v352
  %487 = vmatprep.subr.bf16.mxu0 0
  %488 = vmatpush2.bf16.msra.mxu0 %v351
  %489 = vmatprep.subr.bf16.mxu0 0
  %490 = vmatpush2.bf16.msra.mxu0 %v350
  %491 = vmatprep.subr.bf16.mxu0 0
  %492 = vmatpush2.bf16.msra.mxu0 %v349
  %493 = vmatprep.mubr.bf16.mxu0 %v27
  %494 = vmatmul.mubr.bf16.gmra.mxu0 %v26
  %v495 = vpop.f32.mrf.mxu0
  %v496 = vadd.f32 %v456, %v495
  %v497 = vpop.f32.mrf.mxu0
  %v498 = vpop.f32.mrf.mxu0
  %v499 = vpop.f32.mrf.mxu0
  %500 = vdwg.mxu0
  %501 = vmatprep.subr.bf16.mxu0 0
  %502 = vmatpush1.bf16.msra.mxu0 %v364
  %503 = vmatprep.subr.bf16.mxu0 0
  %504 = vmatpush1.bf16.msra.mxu0 %v363
  %505 = vmatprep.subr.bf16.mxu0 0
  %506 = vmatpush1.bf16.msra.mxu0 %v362
  %507 = vmatprep.subr.bf16.mxu0 0
  %508 = vmatpush1.bf16.msra.mxu0 %v361
  %509 = vmatprep.subr.bf16.mxu0 0
  %510 = vmatpush1.bf16.msra.mxu0 %v360
  %511 = vmatprep.subr.bf16.mxu0 0
  %512 = vmatpush1.bf16.msra.mxu0 %v359
  %513 = vmatprep.subr.bf16.mxu0 0
  %514 = vmatpush1.bf16.msra.mxu0 %v358
  %515 = vmatprep.subr.bf16.mxu0 0
  %516 = vmatpush1.bf16.msra.mxu0 %v357
  %517 = vmatprep.subr.bf16.mxu0 0
  %518 = vmatpush2.bf16.msra.mxu0 %v372
  %519 = vmatprep.subr.bf16.mxu0 0
  %520 = vmatpush2.bf16.msra.mxu0 %v371
  %521 = vmatprep.subr.bf16.mxu0 0
  %522 = vmatpush2.bf16.msra.mxu0 %v370
  %523 = vmatprep.subr.bf16.mxu0 0
  %524 = vmatpush2.bf16.msra.mxu0 %v369
  %525 = vmatprep.subr.bf16.mxu0 0
  %526 = vmatpush2.bf16.msra.mxu0 %v368
  %527 = vmatprep.subr.bf16.mxu0 0
  %528 = vmatpush2.bf16.msra.mxu0 %v367
  %529 = vmatprep.subr.bf16.mxu0 0
  %530 = vmatpush2.bf16.msra.mxu0 %v366
  %531 = vmatprep.subr.bf16.mxu0 0
  %532 = vmatpush2.bf16.msra.mxu0 %v365
  %533 = vmatprep.mubr.bf16.mxu0 %v29
  %534 = vmatmul.mubr.bf16.gmra.mxu0 %v28
  %v535 = vpop.f32.mrf.mxu0
  %v536 = vadd.f32 %v496, %v535
  %v537 = vpop.f32.mrf.mxu0
  %v538 = vpop.f32.mrf.mxu0
  %v539 = vpop.f32.mrf.mxu0
  %540 = vdwg.mxu0
  %v541 = vld [vmem:[%s3] sm:$0xff]
  %v542 = vadd.f32 %v536, %v541
  %vm543 = vcmask 523264
  %544 = vst.msk [vmem:[%s4] sm:$0xff] %vm543, %v542
  // Predicated region
  $region18: #{_lambda_.12} parent=0 // pred_check
    _
  $region19: #{_lambda_.12} parent=0 // pred_check_branch
    %546 = sbr.rel (0) target = $region21
  $region20: #{_lambda_.12} parent=0 // pred_region
    _
  $region21: #{_lambda_.12} parent=0 // pred_fallthru
    _
  // Predicated region
  $region22: #{_lambda_.12} parent=0 // pred_check
    _
  $region23: #{_lambda_.12} parent=0 // pred_check_branch
    %548 = sbr.rel (0) target = $region25
  $region24: #{_lambda_.12} parent=0 // pred_region
    _
  $region25: #{_lambda_.12} parent=0 // pred_fallthru
    _

// kernel: _lambda_.23
$region0: #{_lambda_.23}
  #allocation0 [shape = 'u32[]', space=smem, size = 0x4, offset = 0x4, fixed_abs, tag = 'smem constant byte address 0x4 - core index']
  #allocation1 [shape = 'u32[144,128]{1,0:T(1,128)}', space=vmem, size = 0x12000, scoped, tag = 'internal scratch']
  %s0 = inlined_call_operand.vmem [shape: f32[2,64], index: 0, kind: input, shape index: {}]
  %s1 = inlined_call_operand.vmem [shape: f32[1,64], index: 1, kind: input, shape index: {}]
  %s2 = inlined_call_operand.vmem [shape: f32[1,64], index: 2, kind: input, shape index: {}]
  %s3 = inlined_call_operand.vmem [shape: bf16[64,8], index: 3, kind: input, shape index: {}]
  %s4 = inlined_call_operand.vmem [shape: f32[1,8], index: 4, kind: input, shape index: {}]
  %s5 = inlined_call_operand.hbm [shape: f32[2,8], index: 5, kind: output, shape index: {}]
  %s6 = sld [smem:[#allocation0]]
  $region30: #{_lambda_.23} parent=0
    _
  %s8 = ssub.s32 1, %s6
  %s9 = scalar_select 0, %s8, %s6
  $region1: #{_lambda_.23} parent=0
    #allocation2 [shape = 'u8[1024]{0}', space=vmem, size = 0x400, scoped, tag = 'output window, operand 0, single buffered']
    #allocation3 [shape = 's32[1]{0}', space=sflag, size = 0x4, scoped, tag = 'scoped memory for _lambda_.23']
    %10 = vsyncpa [#allocation3], 0
    // Predicated region
    $region2: #{_lambda_.23} parent=1 // pred_check
      _
    $region3: #{_lambda_.23} parent=1 // pred_check_branch
      %12 = sbr.rel (0) target = $region5
    $region4: #{_lambda_.23} parent=1 // pred_region
      _
    $region5: #{_lambda_.23} parent=1 // pred_fallthru
      _
    // Predicated region
    $region6: #{_lambda_.23} parent=1 // pred_check
      _
    $region7: #{_lambda_.23} parent=1 // pred_check_branch
      %14 = sbr.rel (0) target = $region9
    $region8: #{_lambda_.23} parent=1 // pred_region
      _
    $region9: #{_lambda_.23} parent=1 // pred_fallthru
      _
    // Predicated region
    $region10: #{_lambda_.23} parent=1 // pred_check
      _
    $region11: #{_lambda_.23} parent=1 // pred_check_branch
      %16 = sbr.rel (0) target = $region13
    $region12: #{_lambda_.23} parent=1 // pred_region
      _
    $region13: #{_lambda_.23} parent=1 // pred_fallthru
      _
    // Predicated region
    $region14: #{_lambda_.23} parent=1 // pred_check
      _
    $region15: #{_lambda_.23} parent=1 // pred_check_branch
      %18 = sbr.rel (0) target = $region17
    $region16: #{_lambda_.23} parent=1 // pred_region
      _
    $region17: #{_lambda_.23} parent=1 // pred_fallthru
      _
    // Predicated region
    $region18: #{_lambda_.23} parent=1 // pred_check
      _
    $region19: #{_lambda_.23} parent=1 // pred_check_branch
      %20 = sbr.rel (0) target = $region21
    $region20: #{_lambda_.23} parent=1 // pred_region
      _
    $region21: #{_lambda_.23} parent=1 // pred_fallthru
      _
    %v22 = vld [vmem:[%s0] sm:$0x3]
    %vm23 = vcmask 517120
    %v24 = vsel %vm23, %v22, 0.0
    %25 = vadd.xlane.f32.xlu0 %v24
    %v26 = vpop.xlane.xlu0 %25
    %v27 = vrcp.pop 64.0
    %v28 = vmul.f32 %v26, %v27
    %v29 = vsub.f32 %v22, %v28
    %v30 = vmul.f32 %v29, %v29
    %v31 = vsel %vm23, %v30, 0.0
    %32 = vadd.xlane.f32.xlu0 %v31
    %v33 = vpop.xlane.xlu0 %32
    %v34 = vmul.f32 %v33, %v27
    %v35 = vadd.f32 %v34, 1e-06
    %v36 = vrsqrt.pop %v35
    %v37 = vmul.f32 %v29, %v36
    %v38 = vld [vmem:[%s1] sm:$0x1]
    %v40 = vlaneseq
    %v41 = vshrl.u32 %v40, 7
    %v42 = vsub.s32 0, %v41
    %v43 = vrot.slane %v38, %v42
    %v45 = vmul.f32 %v37, %v43
    %v46 = vld [vmem:[%s2] sm:$0x1]
    %v48 = vlaneseq
    %v49 = vshrl.u32 %v48, 7
    %v50 = vsub.s32 0, %v49
    %v51 = vrot.slane %v46, %v50
    %v53 = vadd.f32 %v45, %v51
    %v54 = vpack.c.bf16 %v53, %v53
    %v55 = vld [vmem:[%s3] sm:$0xf]
    %v56 = vld [vmem:[%s3 + $0x4] sm:$0xf]
    %v57 = vld [vmem:[%s3 + $0x8] sm:$0xf]
    %v58 = vld [vmem:[%s3 + $0xc] sm:$0xf]
    %v59 = vld [vmem:[%s3 + $0x10] sm:$0xf]
    %v60 = vld [vmem:[%s3 + $0x14] sm:$0xf]
    %v61 = vld [vmem:[%s3 + $0x18] sm:$0xf]
    %v62 = vld [vmem:[%s3 + $0x1c] sm:$0xf]
    %v63 = vld [vmem:[%s4] sm:$0x1]
    %v65 = vlaneseq
    %v66 = vshrl.u32 %v65, 7
    %v67 = vsub.s32 0, %v66
    %v68 = vrot.slane %v63, %v67
    %v78 = vunpack.c.l.b16 %v55
    %v79 = vunpack.c.l.b16 %v56
    %v80 = vunpack.c.l.b16 %v57
    %v81 = vunpack.c.l.b16 %v58
    %v82 = vunpack.c.l.b16 %v59
    %v83 = vunpack.c.l.b16 %v60
    %v84 = vunpack.c.l.b16 %v61
    %v85 = vunpack.c.l.b16 %v62
    %v86 = vpack.c.b16 %v79, %v78
    %v87 = vpack.c.b16 %v81, %v80
    %v88 = vpack.c.b16 %v83, %v82
    %v89 = vpack.c.b16 %v85, %v84
    %vm94 = vcmask 523264
    %v96 = vsel %vm94, %v54, 0
    %98 = vmatprep.subr.bf16.mxu0 0
    %99 = vmatpush1.bf16.msra.mxu0 0
    %100 = vmatprep.subr.bf16.mxu0 0
    %101 = vmatpush1.bf16.msra.mxu0 0
    %102 = vmatprep.subr.bf16.mxu0 0
    %103 = vmatpush1.bf16.msra.mxu0 0
    %104 = vmatprep.subr.bf16.mxu0 0
    %105 = vmatpush1.bf16.msra.mxu0 0
    %106 = vmatprep.subr.bf16.mxu0 0
    %107 = vmatpush1.bf16.msra.mxu0 %v89
    %108 = vmatprep.subr.bf16.mxu0 0
    %109 = vmatpush1.bf16.msra.mxu0 %v88
    %110 = vmatprep.subr.bf16.mxu0 0
    %111 = vmatpush1.bf16.msra.mxu0 %v87
    %112 = vmatprep.subr.bf16.mxu0 0
    %113 = vmatpush1.bf16.msra.mxu0 %v86
    %114 = vmatprep.subr.bf16.mxu0 0
    %115 = vmatpush2.bf16.msra.mxu0 0
    %116 = vmatprep.subr.bf16.mxu0 0
    %117 = vmatpush2.bf16.msra.mxu0 0
    %118 = vmatprep.subr.bf16.mxu0 0
    %119 = vmatpush2.bf16.msra.mxu0 0
    %120 = vmatprep.subr.bf16.mxu0 0
    %121 = vmatpush2.bf16.msra.mxu0 0
    %122 = vmatprep.subr.bf16.mxu0 0
    %123 = vmatpush2.bf16.msra.mxu0 0
    %124 = vmatprep.subr.bf16.mxu0 0
    %125 = vmatpush2.bf16.msra.mxu0 0
    %126 = vmatprep.subr.bf16.mxu0 0
    %127 = vmatpush2.bf16.msra.mxu0 0
    %128 = vmatprep.subr.bf16.mxu0 0
    %129 = vmatpush2.bf16.msra.mxu0 0
    %130 = vmatprep.mubr.bf16.mxu0 0
    %131 = vmatmul.mubr.bf16.gmra.mxu0 %v96
    %v132 = vpop.f32.mrf.mxu0
    %v133 = vadd.f32 %v68, %v132
    %v134 = vpop.f32.mrf.mxu0
    %v135 = vpop.f32.mrf.mxu0
    %v136 = vpop.f32.mrf.mxu0
    %137 = vdwg.mxu0
    %v138 = vtanh.pop %v133
    %vm139 = vcmask 58368
    %140 = vst.msk [vmem:[#allocation2] sm:$0x3] %vm139, %v138
    // Predicated region
    $region22: #{_lambda_.23} parent=1 // pred_check
      _
    $region23: #{_lambda_.23} parent=1 // pred_check_branch
      %142 = sbr.rel (0) target = $region25
    $region24: #{_lambda_.23} parent=1 // pred_region
      %s144 = ssub.s32 32, 32
      %145 = vsyncadd [#allocation3], %s144
      %s147 = sshll.u32 [#allocation2], 4
      %s148 = int_to_ptr.vmem [resolvable:$true] %s147
      %150 = dma.vmem_to_hbm [thread:$0]  %s148, 32, %s5, [#allocation3]
    $region25: #{_lambda_.23} parent=1 // pred_fallthru
      _
    // Predicated region
    $region26: #{_lambda_.23} parent=1 // pred_check
      _
    $region27: #{_lambda_.23} parent=1 // pred_check_branch
      %152 = sbr.rel (0) target = $region29
    $region28: #{_lambda_.23} parent=1 // pred_region
      %153 = dma.done [#allocation3], 32
    $region29: #{_lambda_.23} parent=1 // pred_fallthru
      _
    %154 = vsyncpa [#allocation3], 1

// kernel: _lambda_.17
$region0: #{_lambda_.17}
  #allocation0 [shape = 'u32[]', space=smem, size = 0x4, offset = 0x4, fixed_abs, tag = 'smem constant byte address 0x4 - core index']
  #allocation1 [shape = 'u32[144,128]{1,0:T(1,128)}', space=vmem, size = 0x12000, scoped, tag = 'internal scratch']
  %s0 = inlined_call_operand.vmem [shape: bf16[10,128], index: 0, kind: input, shape index: {}]
  %s1 = inlined_call_operand.vmem [shape: bf16[128,64], index: 1, kind: input, shape index: {}]
  %s2 = inlined_call_operand.vmem [shape: f32[1,64], index: 2, kind: input, shape index: {}]
  %s3 = inlined_call_operand.vmem [shape: f32[10,64], index: 3, kind: input, shape index: {}]
  %s4 = inlined_call_operand.vmem [shape: f32[10,64], index: 4, kind: output, shape index: {}]
  %s5 = sld [smem:[#allocation0]]
  $region26: #{_lambda_.17} parent=0
    _
  %s7 = ssub.s32 1, %s5
  %s8 = scalar_select 0, %s7, %s5
  // Predicated region
  $region2: #{_lambda_.17} parent=0 // pred_check
    _
  $region3: #{_lambda_.17} parent=0 // pred_check_branch
    %10 = sbr.rel (0) target = $region5
  $region4: #{_lambda_.17} parent=0 // pred_region
    _
  $region5: #{_lambda_.17} parent=0 // pred_fallthru
    _
  // Predicated region
  $region6: #{_lambda_.17} parent=0 // pred_check
    _
  $region7: #{_lambda_.17} parent=0 // pred_check_branch
    %12 = sbr.rel (0) target = $region9
  $region8: #{_lambda_.17} parent=0 // pred_region
    _
  $region9: #{_lambda_.17} parent=0 // pred_fallthru
    _
  // Predicated region
  $region10: #{_lambda_.17} parent=0 // pred_check
    _
  $region11: #{_lambda_.17} parent=0 // pred_check_branch
    %14 = sbr.rel (0) target = $region13
  $region12: #{_lambda_.17} parent=0 // pred_region
    _
  $region13: #{_lambda_.17} parent=0 // pred_fallthru
    _
  // Predicated region
  $region14: #{_lambda_.17} parent=0 // pred_check
    _
  $region15: #{_lambda_.17} parent=0 // pred_check_branch
    %16 = sbr.rel (0) target = $region17
  $region16: #{_lambda_.17} parent=0 // pred_region
    _
  $region17: #{_lambda_.17} parent=0 // pred_fallthru
    _
  %v18 = vld [vmem:[%s0] sm:$0xf]
  %v19 = vld [vmem:[%s0 + $0x4] sm:$0x1]
  %v20 = vld [vmem:[%s1] sm:$0xf]
  %v21 = vld [vmem:[%s1 + $0x4] sm:$0xf]
  %v22 = vld [vmem:[%s1 + $0x8] sm:$0xf]
  %v23 = vld [vmem:[%s1 + $0xc] sm:$0xf]
  %v24 = vld [vmem:[%s1 + $0x10] sm:$0xf]
  %v25 = vld [vmem:[%s1 + $0x14] sm:$0xf]
  %v26 = vld [vmem:[%s1 + $0x18] sm:$0xf]
  %v27 = vld [vmem:[%s1 + $0x1c] sm:$0xf]
  %v28 = vld [vmem:[%s1 + $0x20] sm:$0xf]
  %v29 = vld [vmem:[%s1 + $0x24] sm:$0xf]
  %v30 = vld [vmem:[%s1 + $0x28] sm:$0xf]
  %v31 = vld [vmem:[%s1 + $0x2c] sm:$0xf]
  %v32 = vld [vmem:[%s1 + $0x30] sm:$0xf]
  %v33 = vld [vmem:[%s1 + $0x34] sm:$0xf]
  %v34 = vld [vmem:[%s1 + $0x38] sm:$0xf]
  %v35 = vld [vmem:[%s1 + $0x3c] sm:$0xf]
  %v36 = vld [vmem:[%s2] sm:$0x1]
  %v38 = vlaneseq
  %v39 = vshrl.u32 %v38, 7
  %v40 = vsub.s32 0, %v39
  %v41 = vrot.slane %v36, %v40
  %v45 = vunpack.c.l.b16 %v18
  %v46 = vunpack.c.l.b16 %v19
  %v47 = vpack.c.b16 %v46, %v45
  %v65 = vunpack.c.l.b16 %v20
  %v66 = vunpack.c.l.b16 %v21
  %v67 = vunpack.c.l.b16 %v22
  %v68 = vunpack.c.l.b16 %v23
  %v69 = vunpack.c.l.b16 %v24
  %v70 = vunpack.c.l.b16 %v25
  %v71 = vunpack.c.l.b16 %v26
  %v72 = vunpack.c.l.b16 %v27
  %v73 = vunpack.c.l.b16 %v28
  %v74 = vunpack.c.l.b16 %v29
  %v75 = vunpack.c.l.b16 %v30
  %v76 = vunpack.c.l.b16 %v31
  %v77 = vunpack.c.l.b16 %v32
  %v78 = vunpack.c.l.b16 %v33
  %v79 = vunpack.c.l.b16 %v34
  %v80 = vunpack.c.l.b16 %v35
  %v81 = vpack.c.b16 %v66, %v65
  %v82 = vpack.c.b16 %v68, %v67
  %v83 = vpack.c.b16 %v70, %v69
  %v84 = vpack.c.b16 %v72, %v71
  %v85 = vpack.c.b16 %v74, %v73
  %v86 = vpack.c.b16 %v76, %v75
  %v87 = vpack.c.b16 %v78, %v77
  %v88 = vpack.c.b16 %v80, %v79
  %97 = vmatprep.subr.bf16.mxu0 0
  %98 = vmatpush1.bf16.msra.mxu0 %v88
  %99 = vmatprep.subr.bf16.mxu0 0
  %100 = vmatpush1.bf16.msra.mxu0 %v87
  %101 = vmatprep.subr.bf16.mxu0 0
  %102 = vmatpush1.bf16.msra.mxu0 %v86
  %103 = vmatprep.subr.bf16.mxu0 0
  %104 = vmatpush1.bf16.msra.mxu0 %v85
  %105 = vmatprep.subr.bf16.mxu0 0
  %106 = vmatpush1.bf16.msra.mxu0 %v84
  %107 = vmatprep.subr.bf16.mxu0 0
  %108 = vmatpush1.bf16.msra.mxu0 %v83
  %109 = vmatprep.subr.bf16.mxu0 0
  %110 = vmatpush1.bf16.msra.mxu0 %v82
  %111 = vmatprep.subr.bf16.mxu0 0
  %112 = vmatpush1.bf16.msra.mxu0 %v81
  %113 = vmatprep.subr.bf16.mxu0 0
  %114 = vmatpush2.bf16.msra.mxu0 0
  %115 = vmatprep.subr.bf16.mxu0 0
  %116 = vmatpush2.bf16.msra.mxu0 0
  %117 = vmatprep.subr.bf16.mxu0 0
  %118 = vmatpush2.bf16.msra.mxu0 0
  %119 = vmatprep.subr.bf16.mxu0 0
  %120 = vmatpush2.bf16.msra.mxu0 0
  %121 = vmatprep.subr.bf16.mxu0 0
  %122 = vmatpush2.bf16.msra.mxu0 0
  %123 = vmatprep.subr.bf16.mxu0 0
  %124 = vmatpush2.bf16.msra.mxu0 0
  %125 = vmatprep.subr.bf16.mxu0 0
  %126 = vmatpush2.bf16.msra.mxu0 0
  %127 = vmatprep.subr.bf16.mxu0 0
  %128 = vmatpush2.bf16.msra.mxu0 0
  %129 = vmatprep.mubr.bf16.mxu0 0
  %130 = vmatmul.mubr.bf16.gmra.mxu0 %v47
  %v131 = vpop.f32.mrf.mxu0
  %v132 = vadd.f32 %v41, %v131
  %v133 = vpop.f32.mrf.mxu0
  %v134 = vpop.f32.mrf.mxu0
  %v135 = vadd.f32 %v41, %v134
  %v136 = vpop.f32.mrf.mxu0
  %137 = vdwg.mxu0
  %v138 = vld [vmem:[%s3] sm:$0xff]
  %v139 = vld [vmem:[%s3 + $0x8] sm:$0x3]
  %v140 = vadd.f32 %v132, %v138
  %v141 = vadd.f32 %v135, %v139
  %vm142 = vcmask 523264
  %143 = vst.msk [vmem:[%s4] sm:$0xff] %vm142, %v140
  %vm144 = vcmask 517120
  %145 = vst.msk [vmem:[%s4 + $0x8] sm:$0x3] %vm144, %v141
  // Predicated region
  $region18: #{_lambda_.17} parent=0 // pred_check
    _
  $region19: #{_lambda_.17} parent=0 // pred_check_branch
    %147 = sbr.rel (0) target = $region21
  $region20: #{_lambda_.17} parent=0 // pred_region
    _
  $region21: #{_lambda_.17} parent=0 // pred_fallthru
    _
  // Predicated region
  $region22: #{_lambda_.17} parent=0 // pred_check
    _
  $region23: #{_lambda_.17} parent=0 // pred_check_branch
    %149 = sbr.rel (0) target = $region25
  $region24: #{_lambda_.17} parent=0 // pred_region
    _
  $region25: #{_lambda_.17} parent=0 // pred_fallthru
    _

// kernel: _lambda_.16
$region0: #{_lambda_.16}
  #allocation0 [shape = 'u32[]', space=smem, size = 0x4, offset = 0x4, fixed_abs, tag = 'smem constant byte address 0x4 - core index']
  #allocation1 [shape = 'u32[144,128]{1,0:T(1,128)}', space=vmem, size = 0x12000, scoped, tag = 'internal scratch']
  %s0 = inlined_call_operand.vmem [shape: f32[10,64], index: 0, kind: input, shape index: {}]
  %s1 = inlined_call_operand.vmem [shape: f32[1,64], index: 1, kind: input, shape index: {}]
  %s2 = inlined_call_operand.vmem [shape: f32[1,64], index: 2, kind: input, shape index: {}]
  %s3 = inlined_call_operand.vmem [shape: bf16[64,128], index: 3, kind: input, shape index: {}]
  %s4 = inlined_call_operand.vmem [shape: f32[1,128], index: 4, kind: input, shape index: {}]
  %s5 = inlined_call_operand.vmem [shape: bf16[10,128], index: 5, kind: output, shape index: {}]
  %s6 = sld [smem:[#allocation0]]
  $region30: #{_lambda_.16} parent=0
    _
  %s8 = ssub.s32 1, %s6
  %s9 = scalar_select 0, %s8, %s6
  // Predicated region
  $region2: #{_lambda_.16} parent=0 // pred_check
    _
  $region3: #{_lambda_.16} parent=0 // pred_check_branch
    %11 = sbr.rel (0) target = $region5
  $region4: #{_lambda_.16} parent=0 // pred_region
    _
  $region5: #{_lambda_.16} parent=0 // pred_fallthru
    _
  // Predicated region
  $region6: #{_lambda_.16} parent=0 // pred_check
    _
  $region7: #{_lambda_.16} parent=0 // pred_check_branch
    %13 = sbr.rel (0) target = $region9
  $region8: #{_lambda_.16} parent=0 // pred_region
    _
  $region9: #{_lambda_.16} parent=0 // pred_fallthru
    _
  // Predicated region
  $region10: #{_lambda_.16} parent=0 // pred_check
    _
  $region11: #{_lambda_.16} parent=0 // pred_check_branch
    %15 = sbr.rel (0) target = $region13
  $region12: #{_lambda_.16} parent=0 // pred_region
    _
  $region13: #{_lambda_.16} parent=0 // pred_fallthru
    _
  // Predicated region
  $region14: #{_lambda_.16} parent=0 // pred_check
    _
  $region15: #{_lambda_.16} parent=0 // pred_check_branch
    %17 = sbr.rel (0) target = $region17
  $region16: #{_lambda_.16} parent=0 // pred_region
    _
  $region17: #{_lambda_.16} parent=0 // pred_fallthru
    _
  // Predicated region
  $region18: #{_lambda_.16} parent=0 // pred_check
    _
  $region19: #{_lambda_.16} parent=0 // pred_check_branch
    %19 = sbr.rel (0) target = $region21
  $region20: #{_lambda_.16} parent=0 // pred_region
    _
  $region21: #{_lambda_.16} parent=0 // pred_fallthru
    _
  %v21 = vld [vmem:[%s0] sm:$0xff]
  %v22 = vld [vmem:[%s0 + $0x8] sm:$0x3]
  %vm23 = vcmask 523264
  %v24 = vsel %vm23, %v21, 0.0
  %25 = vadd.xlane.f32.xlu0 %v24
  %v26 = vpop.xlane.xlu0 %25
  %vm27 = vcmask 517120
  %v28 = vsel %vm27, %v22, 0.0
  %29 = vadd.xlane.f32.xlu0 %v28
  %v30 = vpop.xlane.xlu0 %29
  %v31 = vrcp.pop 64.0
  %v32 = vmul.f32 %v26, %v31
  %v33 = vmul.f32 %v30, %v31
  %v34 = vsub.f32 %v21, %v32
  %v35 = vsub.f32 %v22, %v33
  %v36 = vmul.f32 %v34, %v34
  %v37 = vmul.f32 %v35, %v35
  %v38 = vsel %vm23, %v36, 0.0
  %39 = vadd.xlane.f32.xlu0 %v38
  %v40 = vpop.xlane.xlu0 %39
  %v41 = vsel %vm27, %v37, 0.0
  %42 = vadd.xlane.f32.xlu0 %v41
  %v43 = vpop.xlane.xlu0 %42
  %v44 = vmul.f32 %v40, %v31
  %v45 = vmul.f32 %v43, %v31
  %v46 = vadd.f32 %v44, 1e-06
  %v47 = vadd.f32 %v45, 1e-06
  %v48 = vrsqrt.pop %v46
  %v49 = vrsqrt.pop %v47
  %v50 = vmul.f32 %v34, %v48
  %v51 = vmul.f32 %v35, %v49
  %v52 = vld [vmem:[%s1] sm:$0x1]
  %v54 = vlaneseq
  %v55 = vshrl.u32 %v54, 7
  %v56 = vsub.s32 0, %v55
  %v57 = vrot.slane %v52, %v56
  %v59 = vmul.f32 %v50, %v57
  %v60 = vmul.f32 %v51, %v57
  %v61 = vld [vmem:[%s2] sm:$0x1]
  %v63 = vlaneseq
  %v64 = vshrl.u32 %v63, 7
  %v65 = vsub.s32 0, %v64
  %v66 = vrot.slane %v61, %v65
  %v68 = vadd.f32 %v59, %v66
  %v69 = vadd.f32 %v60, %v66
  %v70 = vpack.c.bf16 %v69, %v68
  %v71 = vld [vmem:[%s3] sm:$0xf]
  %v72 = vld [vmem:[%s3 + $0x4] sm:$0xf]
  %v73 = vld [vmem:[%s3 + $0x8] sm:$0xf]
  %v74 = vld [vmem:[%s3 + $0xc] sm:$0xf]
  %v75 = vld [vmem:[%s3 + $0x10] sm:$0xf]
  %v76 = vld [vmem:[%s3 + $0x14] sm:$0xf]
  %v77 = vld [vmem:[%s3 + $0x18] sm:$0xf]
  %v78 = vld [vmem:[%s3 + $0x1c] sm:$0xf]
  %v79 = vld [vmem:[%s4] sm:$0x1]
  %v81 = vlaneseq
  %v82 = vshrl.u32 %v81, 7
  %v83 = vsub.s32 0, %v82
  %v84 = vrot.slane %v79, %v83
  %v94 = vunpack.c.l.b16 %v71
  %v95 = vunpack.c.l.b16 %v72
  %v96 = vunpack.c.l.b16 %v73
  %v97 = vunpack.c.l.b16 %v74
  %v98 = vunpack.c.l.b16 %v75
  %v99 = vunpack.c.l.b16 %v76
  %v100 = vunpack.c.l.b16 %v77
  %v101 = vunpack.c.l.b16 %v78
  %v102 = vpack.c.b16 %v95, %v94
  %v103 = vpack.c.b16 %v97, %v96
  %v104 = vpack.c.b16 %v99, %v98
  %v105 = vpack.c.b16 %v101, %v100
  %v111 = vsel %vm23, %v70, 0
  %113 = vmatprep.subr.bf16.mxu0 0
  %114 = vmatpush1.bf16.msra.mxu0 0
  %115 = vmatprep.subr.bf16.mxu0 0
  %116 = vmatpush1.bf16.msra.mxu0 0
  %117 = vmatprep.subr.bf16.mxu0 0
  %118 = vmatpush1.bf16.msra.mxu0 0
  %119 = vmatprep.subr.bf16.mxu0 0
  %120 = vmatpush1.bf16.msra.mxu0 0
  %121 = vmatprep.subr.bf16.mxu0 0
  %122 = vmatpush1.bf16.msra.mxu0 %v105
  %123 = vmatprep.subr.bf16.mxu0 0
  %124 = vmatpush1.bf16.msra.mxu0 %v104
  %125 = vmatprep.subr.bf16.mxu0 0
  %126 = vmatpush1.bf16.msra.mxu0 %v103
  %127 = vmatprep.subr.bf16.mxu0 0
  %128 = vmatpush1.bf16.msra.mxu0 %v102
  %129 = vmatprep.subr.bf16.mxu0 0
  %130 = vmatpush2.bf16.msra.mxu0 0
  %131 = vmatprep.subr.bf16.mxu0 0
  %132 = vmatpush2.bf16.msra.mxu0 0
  %133 = vmatprep.subr.bf16.mxu0 0
  %134 = vmatpush2.bf16.msra.mxu0 0
  %135 = vmatprep.subr.bf16.mxu0 0
  %136 = vmatpush2.bf16.msra.mxu0 0
  %137 = vmatprep.subr.bf16.mxu0 0
  %138 = vmatpush2.bf16.msra.mxu0 0
  %139 = vmatprep.subr.bf16.mxu0 0
  %140 = vmatpush2.bf16.msra.mxu0 0
  %141 = vmatprep.subr.bf16.mxu0 0
  %142 = vmatpush2.bf16.msra.mxu0 0
  %143 = vmatprep.subr.bf16.mxu0 0
  %144 = vmatpush2.bf16.msra.mxu0 0
  %145 = vmatprep.mubr.bf16.mxu0 0
  %146 = vmatmul.mubr.bf16.gmra.mxu0 %v111
  %v147 = vpop.f32.mrf.mxu0
  %v148 = vadd.f32 %v84, %v147
  %v149 = vpop.f32.mrf.mxu0
  %v150 = vpop.f32.mrf.mxu0
  %v151 = vadd.f32 %v84, %v150
  %v152 = vpop.f32.mrf.mxu0
  %153 = vdwg.mxu0
  %v154 = vmul.f32 %v148, 0.5
  %v155 = vmul.f32 %v151, 0.5
  %v156 = vmul.f32 %v148, 0.70710677
  %v157 = vmul.f32 %v151, 0.70710677
  %v158 = verf.f32.pop %v156
  %v159 = verf.f32.pop %v157
  %v160 = vadd.f32 %v158, 1.0
  %v161 = vadd.f32 %v159, 1.0
  %v162 = vmul.f32 %v154, %v160
  %v163 = vmul.f32 %v155, %v161
  %v164 = vpack.c.bf16 %v163, %v162
  %v166 = vunpack.c.l.b16 %v164
  %v167 = vunpack.c.h.b16 %v164
  %v168 = vpack.c.b16 %v166, %v166
  %v169 = vpack.c.b16 %v167, %v167
  %172 = vst [vmem:[%s5] sm:$0xf] %v168
  %173 = vst [vmem:[%s5 + $0x4] sm:$0x1] %v169
  // Predicated region
  $region22: #{_lambda_.16} parent=0 // pred_check
    _
  $region23: #{_lambda_.16} parent=0 // pred_check_branch
    %175 = sbr.rel (0) target = $region25
  $region24: #{_lambda_.16} parent=0 // pred_region
    _
  $region25: #{_lambda_.16} parent=0 // pred_fallthru
    _
  // Predicated region
  $region26: #{_lambda_.16} parent=0 // pred_check
    _
  $region27: #{_lambda_.16} parent=0 // pred_check_branch
    %177 = sbr.rel (0) target = $region29
  $region28: #{_lambda_.16} parent=0 // pred_region
    _
  $region29: #{_lambda_.16} parent=0 // pred_fallthru
    _

</llo_original>
